<compile_context>
chip_gen: v7x
topology: tpu7x:2x2x1
jax: 0.10.0
libtpu: 0.0.40
codegen_flags: <defaults>
</compile_context>

<pallas_src>
import functools

import numpy as np
import jax
import jax.numpy as jnp
from jax import lax
from jax.experimental import pallas as pl
from jax.experimental.pallas import tpu as pltpu


# ---------------------------------------------------------------------------
# Fused Pallas kernel (one batch element per grid step)
# ---------------------------------------------------------------------------
def _up_fused_kernel(x1_ref, x2_ref, ah_ref, awct_ref,
                     wb1a_ref, wb1b_ref, s1_ref, b1_ref,
                     wb2_ref, s2_ref, b2_ref,
                     o_ref,
                     x1pad, x2pad, y1pad, *, H2):
    f32 = jnp.float32

    # --- bilinear upsample of x1 as two lane-dense 2-D MXU matmuls --------
    # x1_ref[0]: (H, W*C1);  ah: (H2, H);  awct = kron(aw, I_C1).T: (W*C1, W2*C1)
    t = jnp.dot(ah_ref[...], x1_ref[0].astype(f32),
                preferred_element_type=f32)                  # (H2, W*C1)
    x1u = jnp.dot(t, awct_ref[...], preferred_element_type=f32)  # (H2, W2*C1)

    # --- vertical zero-pad (halo) into VMEM scratches; horizontal pad is
    #     folded into the banded weight matrices -----------------------------
    x2pad[...] = jnp.zeros_like(x2pad)
    x1pad[...] = jnp.zeros_like(x1pad)
    x2pad[1:H2 + 1, :] = x2_ref[0].astype(f32)
    x1pad[1:H2 + 1, :] = x1u

    # --- conv1 (3x3, concat-free split-K over the two sources) + BN + ReLU --
    acc = jnp.dot(x2pad[0:H2, :], wb1a_ref[0], preferred_element_type=f32)
    acc += jnp.dot(x2pad[1:H2 + 1, :], wb1a_ref[1], preferred_element_type=f32)
    acc += jnp.dot(x2pad[2:H2 + 2, :], wb1a_ref[2], preferred_element_type=f32)
    acc += jnp.dot(x1pad[0:H2, :], wb1b_ref[0], preferred_element_type=f32)
    acc += jnp.dot(x1pad[1:H2 + 1, :], wb1b_ref[1], preferred_element_type=f32)
    acc += jnp.dot(x1pad[2:H2 + 2, :], wb1b_ref[2], preferred_element_type=f32)
    y1 = jnp.maximum(acc * s1_ref[...] + b1_ref[...], 0.0)   # (H2, W2*Cmid)

    # --- conv2 (3x3) + BN + ReLU --------------------------------------------
    y1pad[...] = jnp.zeros_like(y1pad)
    y1pad[1:H2 + 1, :] = y1
    acc2 = jnp.dot(y1pad[0:H2, :], wb2_ref[0], preferred_element_type=f32)
    acc2 += jnp.dot(y1pad[1:H2 + 1, :], wb2_ref[1], preferred_element_type=f32)
    acc2 += jnp.dot(y1pad[2:H2 + 2, :], wb2_ref[2], preferred_element_type=f32)
    y2 = jnp.maximum(acc2 * s2_ref[...] + b2_ref[...], 0.0)  # (H2, W2*Cout)

    o_ref[0] = y2.astype(o_ref.dtype)


def _const_spec(arr):
    nd = arr.ndim
    return pl.BlockSpec(arr.shape, lambda i, _nd=nd: (0,) * _nd)


def _call_fused(x1f, x2f, prep, *, H, W, C1, Cmid, Cout):
    N, H2, w2c1 = x2f.shape
    W2 = w2c1 // C1
    kern = functools.partial(_up_fused_kernel, H2=H2)
    return pl.pallas_call(
        kern,
        out_shape=jax.ShapeDtypeStruct((N, H2, W2 * Cout), x1f.dtype),
        grid=(N,),
        in_specs=[
            pl.BlockSpec((1, H, W * C1), lambda i: (i, 0, 0)),
            pl.BlockSpec((1, H2, W2 * C1), lambda i: (i, 0, 0)),
            _const_spec(prep["ah"]),
            _const_spec(prep["awct"]),
            _const_spec(prep["wb1a"]),
            _const_spec(prep["wb1b"]),
            _const_spec(prep["s1"]),
            _const_spec(prep["b1"]),
            _const_spec(prep["wb2"]),
            _const_spec(prep["s2"]),
            _const_spec(prep["b2"]),
        ],
        out_specs=pl.BlockSpec((1, H2, W2 * Cout), lambda i: (i, 0, 0)),
        scratch_shapes=[
            pltpu.VMEM((H2 + 2, W2 * C1), jnp.float32),    # x1pad
            pltpu.VMEM((H2 + 2, W2 * C1), jnp.float32),    # x2pad
            pltpu.VMEM((H2 + 2, W2 * Cmid), jnp.float32),  # y1pad
        ],
        compiler_params=pltpu.CompilerParams(
            dimension_semantics=("parallel",)),
    )(x1f, x2f, prep["ah"], prep["awct"],
      prep["wb1a"], prep["wb1b"], prep["s1"], prep["b1"],
      prep["wb2"], prep["s2"], prep["b2"])


# ---------------------------------------------------------------------------
# Host-side parameter preprocessing (done once)
# ---------------------------------------------------------------------------
def interp_matrix(out_size, in_size):
    """Row-stochastic 1-D linear-interp matrix, align_corners=True."""
    if in_size == 1:
        return np.ones((out_size, 1), np.float32)
    i = np.arange(out_size, dtype=np.float64)
    src = i * (in_size - 1) / (out_size - 1)
    f = np.clip(np.floor(src).astype(np.int64), 0, in_size - 2)
    frac = (src - f).astype(np.float32)
    a = np.zeros((out_size, in_size), np.float32)
    a[np.arange(out_size), f] += 1.0 - frac
    a[np.arange(out_size), f + 1] += frac
    return a


def banded_conv_weight(w_hwio, W):
    """(3,3,Cin,Cout) HWIO -> (3, W*Cin, W*Cout) banded matrices (one per ky).

    Horizontal 'same' zero padding is folded into the band structure, so the
    kernel only needs plain 2-D matmuls on the lane-flat (H, W*C) layout."""
    kh, kw, cin, cout = w_hwio.shape
    wb = np.zeros((kh, W * cin, W * cout), np.float32)
    for ky in range(kh):
        for kx in range(kw):
            for wo in range(W):
                wi = wo + kx - 1
                if 0 <= wi < W:
                    wb[ky, wi * cin:(wi + 1) * cin,
                       wo * cout:(wo + 1) * cout] = w_hwio[ky, kx]
    return wb


def prepare_up(params, x1_shape, x2_shape):
    """Precompute interp + banded-conv matrices and tiled BN scale/bias."""
    N, C1, H, W = x1_shape
    N2, C1b, H2, W2 = x2_shape
    assert N == N2 and C1 == C1b

    w1 = np.asarray(params["w1"], np.float32)   # (3,3,2*C1,Cmid) HWIO
    w2 = np.asarray(params["w2"], np.float32)   # (3,3,Cmid,Cout) HWIO
    assert w1.shape[2] == 2 * C1

    # interpolation matrices; the F.pad that aligns x1 to x2 becomes zero rows
    dy, dx = H2 - 2 * H, W2 - 2 * W
    assert dy >= 0 and dx >= 0  # TODO(synk): negative diff (cropping) unsupported
    ah = np.zeros((H2, H), np.float32)
    ah[dy // 2: dy // 2 + 2 * H, :] = interp_matrix(2 * H, H)
    aw = np.zeros((W2, W), np.float32)
    aw[dx // 2: dx // 2 + 2 * W, :] = interp_matrix(2 * W, W)
    awct = np.kron(aw, np.eye(C1, dtype=np.float32)).T      # (W*C1, W2*C1)

    wb1a = banded_conv_weight(w1[:, :, :C1, :], W2)          # x2 channels
    wb1b = banded_conv_weight(w1[:, :, C1:, :], W2)          # upsampled x1
    wb2 = banded_conv_weight(w2, W2)

    s1 = np.tile(np.asarray(params["s1"], np.float32), W2)[None, :]
    b1 = np.tile(np.asarray(params["b1"], np.float32), W2)[None, :]
    s2 = np.tile(np.asarray(params["s2"], np.float32), W2)[None, :]
    b2 = np.tile(np.asarray(params["b2"], np.float32), W2)[None, :]

    host = dict(ah=ah, awct=awct, wb1a=wb1a, wb1b=wb1b, wb2=wb2,
                s1=s1, b1=b1, s2=s2, b2=b2)
    return {k: jnp.asarray(v) for k, v in host.items()}


def fold_bn(gamma, beta, running_mean, running_var, eps=1e-5):
    scale = gamma / jnp.sqrt(running_var + eps)
    bias = beta - running_mean * scale
    return scale, bias


def init_up_params(key, in_channels, out_channels):
    """Deterministic synthetic parameters (bilinear=True path)."""
    mid_channels = in_channels // 2
    ks = jax.random.split(key, 10)

    def conv_w(k, cin, cout):
        return 0.1 * jax.random.normal(k, (3, 3, cin, cout), jnp.float32)

    def bn(kg, kb, km, kv, c):
        gamma = 1.0 + 0.1 * jax.random.normal(kg, (c,), jnp.float32)
        beta = 0.1 * jax.random.normal(kb, (c,), jnp.float32)
        mean = 0.1 * jax.random.normal(km, (c,), jnp.float32)
        var = 0.5 + jnp.abs(jax.random.normal(kv, (c,), jnp.float32))
        return fold_bn(gamma, beta, mean, var)

    w1 = conv_w(ks[0], in_channels, mid_channels)
    s1, b1 = bn(ks[1], ks[2], ks[3], ks[4], mid_channels)
    w2 = conv_w(ks[5], mid_channels, out_channels)
    s2, b2 = bn(ks[6], ks[7], ks[8], ks[9], out_channels)   # fixed key bug
    return dict(w1=w1, s1=s1, b1=b1, w2=w2, s2=s2, b2=b2)


# ---------------------------------------------------------------------------
# Forward (NCHW in / NCHW out, like the PyTorch module)
# ---------------------------------------------------------------------------
@jax.jit
def up_forward(x1_nchw, x2_nchw, prep):
    N, C1, H, W = x1_nchw.shape
    _, _, H2, W2 = x2_nchw.shape
    Cmid = prep["wb2"].shape[1] // W2
    Cout = prep["wb2"].shape[2] // W2

    # NCHW -> lane-flat NHWC: (N, H, W*C)
    x1f = jnp.transpose(x1_nchw, (0, 2, 3, 1)).reshape(N, H, W * C1)
    x2f = jnp.transpose(x2_nchw, (0, 2, 3, 1)).reshape(N, H2, W2 * C1)

    yf = _call_fused(x1f, x2f, prep, H=H, W=W, C1=C1, Cmid=Cmid, Cout=Cout)

    y = yf.reshape(N, H2, W2, Cout)
    return jnp.transpose(y, (0, 3, 1, 2))


# ---------------------------------------------------------------------------
# Pure-JAX reference (for correctness check)
# ---------------------------------------------------------------------------
def ref_forward(x1_nchw, x2_nchw, params):
    hi = lax.Precision.HIGHEST
    x1 = jnp.transpose(x1_nchw, (0, 2, 3, 1))
    x2 = jnp.transpose(x2_nchw, (0, 2, 3, 1))
    n, h, w, c = x1.shape
    ah = jnp.asarray(interp_matrix(2 * h, h))
    aw = jnp.asarray(interp_matrix(2 * w, w))
    up = jnp.einsum("ih,nhwc->niwc", ah, x1, precision=hi)
    up = jnp.einsum("jw,niwc->nijc", aw, up, precision=hi)
    dy = x2.shape[1] - up.shape[1]
    dx = x2.shape[2] - up.shape[2]
    up = jnp.pad(up, ((0, 0), (dy // 2, dy - dy // 2),
                      (dx // 2, dx - dx // 2), (0, 0)))
    x = jnp.concatenate([x2, up], axis=-1)

    def cbr(x, w, s, b):
        y = lax.conv_general_dilated(
            x, w, (1, 1), "SAME",
            dimension_numbers=("NHWC", "HWIO", "NHWC"), precision=hi)
        return jnp.maximum(y * s + b, 0.0)

    y = cbr(x, params["w1"], params["s1"], params["b1"])
    y = cbr(y, params["w2"], params["s2"], params["b2"])
    return jnp.transpose(y, (0, 3, 1, 2))


# ---------------------------------------------------------------------------
if __name__ == "__main__":
    # Up(in_channels=8, out_channels=4, bilinear=True)
    #   x1: (N, in/2, H, W), x2: (N, in/2, 2H, 2W)
    N, IN_CH, OUT_CH, H, W = 2, 8, 4, 8, 8

    key = jax.random.PRNGKey(0)
    k_x1, k_x2, k_p = jax.random.split(key, 3)
    x1 = jax.random.normal(k_x1, (N, IN_CH // 2, H, W), jnp.float32)
    x2 = jax.random.normal(k_x2, (N, IN_CH // 2, 2 * H, 2 * W), jnp.float32)
    params = init_up_params(k_p, IN_CH, OUT_CH)

    prep = prepare_up(params, x1.shape, x2.shape)

    out = jax.block_until_ready(up_forward(x1, x2, prep))
    ref = jax.block_until_ready(ref_forward(x1, x2, params))

    assert out.shape == (N, OUT_CH, 2 * H, 2 * W), out.shape
    max_err = float(jnp.max(jnp.abs(out - ref)))
    assert jnp.allclose(out, ref, atol=2e-3, rtol=2e-3), max_err

    print("KERNEL_OK")
</pallas_src>

<mosaic_0001>
module attributes {stable_mosaic.version = 11 : i64} {
  func.func @_up_fused_kernel(%arg0: i32, %arg1: memref<1x8x32xf32, #tpu.memory_space<vmem>>, %arg2: memref<1x16x64xf32, #tpu.memory_space<vmem>>, %arg3: memref<16x8xf32, #tpu.memory_space<vmem>>, %arg4: memref<32x64xf32, #tpu.memory_space<vmem>>, %arg5: memref<3x64x64xf32, #tpu.memory_space<vmem>>, %arg6: memref<3x64x64xf32, #tpu.memory_space<vmem>>, %arg7: memref<1x64xf32, #tpu.memory_space<vmem>>, %arg8: memref<1x64xf32, #tpu.memory_space<vmem>>, %arg9: memref<3x64x64xf32, #tpu.memory_space<vmem>>, %arg10: memref<1x64xf32, #tpu.memory_space<vmem>>, %arg11: memref<1x64xf32, #tpu.memory_space<vmem>>, %arg12: memref<1x16x64xf32, #tpu.memory_space<vmem>>, %arg13: memref<18x64xf32, #tpu.memory_space<vmem>>, %arg14: memref<18x64xf32, #tpu.memory_space<vmem>>, %arg15: memref<18x64xf32, #tpu.memory_space<vmem>>) attributes {dimension_semantics = [#tpu.dimension_semantics<parallel>], iteration_bounds = array<i64: 2>, scalar_prefetch = 0 : i64, scratch_operands = 3 : i64, tpu.core_type = #tpu.core_type<tc>, window_params = [{transform_indices = @transform_0, window_bounds = array<i64: 1, 8, 32>}, {transform_indices = @transform_1, window_bounds = array<i64: 1, 16, 64>}, {pipeline_mode = #tpu.pipeline_mode<synchronous>, transform_indices = @transform_2, window_bounds = array<i64: 16, 8>}, {pipeline_mode = #tpu.pipeline_mode<synchronous>, transform_indices = @transform_3, window_bounds = array<i64: 32, 64>}, {pipeline_mode = #tpu.pipeline_mode<synchronous>, transform_indices = @transform_4, window_bounds = array<i64: 3, 64, 64>}, {pipeline_mode = #tpu.pipeline_mode<synchronous>, transform_indices = @transform_5, window_bounds = array<i64: 3, 64, 64>}, {pipeline_mode = #tpu.pipeline_mode<synchronous>, transform_indices = @transform_6, window_bounds = array<i64: 1, 64>}, {pipeline_mode = #tpu.pipeline_mode<synchronous>, transform_indices = @transform_7, window_bounds = array<i64: 1, 64>}, {pipeline_mode = #tpu.pipeline_mode<synchronous>, transform_indices = @transform_8, window_bounds = array<i64: 3, 64, 64>}, {pipeline_mode = #tpu.pipeline_mode<synchronous>, transform_indices = @transform_9, window_bounds = array<i64: 1, 64>}, {pipeline_mode = #tpu.pipeline_mode<synchronous>, transform_indices = @transform_10, window_bounds = array<i64: 1, 64>}, {transform_indices = @transform_11, window_bounds = array<i64: 1, 16, 64>}]} {
    %c0 = arith.constant 0 : index
    %c0_0 = arith.constant 0 : index
    %0 = vector.load %arg3[%c0, %c0_0] : memref<16x8xf32, #tpu.memory_space<vmem>>, vector<16x8xf32>
    %c0_1 = arith.constant 0 : index
    %c0_2 = arith.constant 0 : index
    %c0_3 = arith.constant 0 : index
    %1 = vector.load %arg1[%c0_1, %c0_2, %c0_3] : memref<1x8x32xf32, #tpu.memory_space<vmem>>, vector<1x8x32xf32>
    %2 = vector.shape_cast %1 : vector<1x8x32xf32> to vector<8x32xf32>
    %cst = arith.constant dense<0.000000e+00> : vector<16x32xf32>
    %3 = tpu.matmul %0, %2, %cst {dimension_numbers = #tpu.dot_dimension_numbers<[1], [0], [0], [1], [0, 0, 1, 1], [], []>} : vector<16x8xf32>, vector<8x32xf32>, vector<16x32xf32> -> vector<16x32xf32>
    %c0_4 = arith.constant 0 : index
    %c0_5 = arith.constant 0 : index
    %4 = vector.load %arg4[%c0_4, %c0_5] : memref<32x64xf32, #tpu.memory_space<vmem>>, vector<32x64xf32>
    %cst_6 = arith.constant dense<0.000000e+00> : vector<16x64xf32>
    %5 = tpu.matmul %3, %4, %cst_6 {dimension_numbers = #tpu.dot_dimension_numbers<[1], [0], [0], [1], [0, 0, 1, 1], [], []>} : vector<16x32xf32>, vector<32x64xf32>, vector<16x64xf32> -> vector<16x64xf32>
    %cst_7 = arith.constant 0.000000e+00 : f32
    %6 = vector.broadcast %cst_7 : f32 to vector<18x64xf32>
    %c0_8 = arith.constant 0 : index
    %c0_9 = arith.constant 0 : index
    %7 = vector.load %arg14[%c0_8, %c0_9] : memref<18x64xf32, #tpu.memory_space<vmem>>, vector<18x64xf32>
    tpu.vector_store %arg14[%c0_8, %c0_9], %6 {strides = array<i32>} : memref<18x64xf32, #tpu.memory_space<vmem>>, vector<18x64xf32>,
    %cst_10 = arith.constant 0.000000e+00 : f32
    %8 = vector.broadcast %cst_10 : f32 to vector<18x64xf32>
    %c0_11 = arith.constant 0 : index
    %c0_12 = arith.constant 0 : index
    %9 = vector.load %arg13[%c0_11, %c0_12] : memref<18x64xf32, #tpu.memory_space<vmem>>, vector<18x64xf32>
    tpu.vector_store %arg13[%c0_11, %c0_12], %8 {strides = array<i32>} : memref<18x64xf32, #tpu.memory_space<vmem>>, vector<18x64xf32>,
    %c0_13 = arith.constant 0 : index
    %c0_14 = arith.constant 0 : index
    %c0_15 = arith.constant 0 : index
    %10 = vector.load %arg2[%c0_13, %c0_14, %c0_15] : memref<1x16x64xf32, #tpu.memory_space<vmem>>, vector<1x16x64xf32>
    %11 = vector.shape_cast %10 : vector<1x16x64xf32> to vector<16x64xf32>
    %c1 = arith.constant 1 : index
    %c0_16 = arith.constant 0 : index
    %12 = vector.load %arg14[%c1, %c0_16] : memref<18x64xf32, #tpu.memory_space<vmem>>, vector<16x64xf32>
    tpu.vector_store %arg14[%c1, %c0_16], %11 {strides = array<i32>} : memref<18x64xf32, #tpu.memory_space<vmem>>, vector<16x64xf32>,
    %c1_17 = arith.constant 1 : index
    %c0_18 = arith.constant 0 : index
    %13 = vector.load %arg13[%c1_17, %c0_18] : memref<18x64xf32, #tpu.memory_space<vmem>>, vector<16x64xf32>
    tpu.vector_store %arg13[%c1_17, %c0_18], %5 {strides = array<i32>} : memref<18x64xf32, #tpu.memory_space<vmem>>, vector<16x64xf32>,
    %c0_19 = arith.constant 0 : index
    %c0_20 = arith.constant 0 : index
    %14 = vector.load %arg14[%c0_19, %c0_20] : memref<18x64xf32, #tpu.memory_space<vmem>>, vector<16x64xf32>
    %c0_21 = arith.constant 0 : index
    %c0_22 = arith.constant 0 : index
    %c0_23 = arith.constant 0 : index
    %15 = vector.load %arg5[%c0_21, %c0_22, %c0_23] : memref<3x64x64xf32, #tpu.memory_space<vmem>>, vector<1x64x64xf32>
    %16 = vector.shape_cast %15 : vector<1x64x64xf32> to vector<64x64xf32>
    %cst_24 = arith.constant dense<0.000000e+00> : vector<16x64xf32>
    %17 = tpu.matmul %14, %16, %cst_24 {dimension_numbers = #tpu.dot_dimension_numbers<[1], [0], [0], [1], [0, 0, 1, 1], [], []>} : vector<16x64xf32>, vector<64x64xf32>, vector<16x64xf32> -> vector<16x64xf32>
    %c1_25 = arith.constant 1 : index
    %c0_26 = arith.constant 0 : index
    %18 = vector.load %arg14[%c1_25, %c0_26] : memref<18x64xf32, #tpu.memory_space<vmem>>, vector<16x64xf32>
    %c1_27 = arith.constant 1 : index
    %c0_28 = arith.constant 0 : index
    %c0_29 = arith.constant 0 : index
    %19 = vector.load %arg5[%c1_27, %c0_28, %c0_29] : memref<3x64x64xf32, #tpu.memory_space<vmem>>, vector<1x64x64xf32>
    %20 = vector.shape_cast %19 : vector<1x64x64xf32> to vector<64x64xf32>
    %cst_30 = arith.constant dense<0.000000e+00> : vector<16x64xf32>
    %21 = tpu.matmul %18, %20, %cst_30 {dimension_numbers = #tpu.dot_dimension_numbers<[1], [0], [0], [1], [0, 0, 1, 1], [], []>} : vector<16x64xf32>, vector<64x64xf32>, vector<16x64xf32> -> vector<16x64xf32>
    %22 = arith.addf %17, %21 : vector<16x64xf32>
    %c2 = arith.constant 2 : index
    %c0_31 = arith.constant 0 : index
    %23 = vector.load %arg14[%c2, %c0_31] : memref<18x64xf32, #tpu.memory_space<vmem>>, vector<16x64xf32>
    %c2_32 = arith.constant 2 : index
    %c0_33 = arith.constant 0 : index
    %c0_34 = arith.constant 0 : index
    %24 = vector.load %arg5[%c2_32, %c0_33, %c0_34] : memref<3x64x64xf32, #tpu.memory_space<vmem>>, vector<1x64x64xf32>
    %25 = vector.shape_cast %24 : vector<1x64x64xf32> to vector<64x64xf32>
    %cst_35 = arith.constant dense<0.000000e+00> : vector<16x64xf32>
    %26 = tpu.matmul %23, %25, %cst_35 {dimension_numbers = #tpu.dot_dimension_numbers<[1], [0], [0], [1], [0, 0, 1, 1], [], []>} : vector<16x64xf32>, vector<64x64xf32>, vector<16x64xf32> -> vector<16x64xf32>
    %27 = arith.addf %22, %26 : vector<16x64xf32>
    %c0_36 = arith.constant 0 : index
    %c0_37 = arith.constant 0 : index
    %28 = vector.load %arg13[%c0_36, %c0_37] : memref<18x64xf32, #tpu.memory_space<vmem>>, vector<16x64xf32>
    %c0_38 = arith.constant 0 : index
    %c0_39 = arith.constant 0 : index
    %c0_40 = arith.constant 0 : index
    %29 = vector.load %arg6[%c0_38, %c0_39, %c0_40] : memref<3x64x64xf32, #tpu.memory_space<vmem>>, vector<1x64x64xf32>
    %30 = vector.shape_cast %29 : vector<1x64x64xf32> to vector<64x64xf32>
    %cst_41 = arith.constant dense<0.000000e+00> : vector<16x64xf32>
    %31 = tpu.matmul %28, %30, %cst_41 {dimension_numbers = #tpu.dot_dimension_numbers<[1], [0], [0], [1], [0, 0, 1, 1], [], []>} : vector<16x64xf32>, vector<64x64xf32>, vector<16x64xf32> -> vector<16x64xf32>
    %32 = arith.addf %27, %31 : vector<16x64xf32>
    %c1_42 = arith.constant 1 : index
    %c0_43 = arith.constant 0 : index
    %33 = vector.load %arg13[%c1_42, %c0_43] : memref<18x64xf32, #tpu.memory_space<vmem>>, vector<16x64xf32>
    %c1_44 = arith.constant 1 : index
    %c0_45 = arith.constant 0 : index
    %c0_46 = arith.constant 0 : index
    %34 = vector.load %arg6[%c1_44, %c0_45, %c0_46] : memref<3x64x64xf32, #tpu.memory_space<vmem>>, vector<1x64x64xf32>
    %35 = vector.shape_cast %34 : vector<1x64x64xf32> to vector<64x64xf32>
    %cst_47 = arith.constant dense<0.000000e+00> : vector<16x64xf32>
    %36 = tpu.matmul %33, %35, %cst_47 {dimension_numbers = #tpu.dot_dimension_numbers<[1], [0], [0], [1], [0, 0, 1, 1], [], []>} : vector<16x64xf32>, vector<64x64xf32>, vector<16x64xf32> -> vector<16x64xf32>
    %37 = arith.addf %32, %36 : vector<16x64xf32>
    %c2_48 = arith.constant 2 : index
    %c0_49 = arith.constant 0 : index
    %38 = vector.load %arg13[%c2_48, %c0_49] : memref<18x64xf32, #tpu.memory_space<vmem>>, vector<16x64xf32>
    %c2_50 = arith.constant 2 : index
    %c0_51 = arith.constant 0 : index
    %c0_52 = arith.constant 0 : index
    %39 = vector.load %arg6[%c2_50, %c0_51, %c0_52] : memref<3x64x64xf32, #tpu.memory_space<vmem>>, vector<1x64x64xf32>
    %40 = vector.shape_cast %39 : vector<1x64x64xf32> to vector<64x64xf32>
    %cst_53 = arith.constant dense<0.000000e+00> : vector<16x64xf32>
    %41 = tpu.matmul %38, %40, %cst_53 {dimension_numbers = #tpu.dot_dimension_numbers<[1], [0], [0], [1], [0, 0, 1, 1], [], []>} : vector<16x64xf32>, vector<64x64xf32>, vector<16x64xf32> -> vector<16x64xf32>
    %42 = arith.addf %37, %41 : vector<16x64xf32>
    %c0_54 = arith.constant 0 : index
    %c0_55 = arith.constant 0 : index
    %43 = vector.load %arg7[%c0_54, %c0_55] : memref<1x64xf32, #tpu.memory_space<vmem>>, vector<1x64xf32>
    %44 = vector.broadcast %43 : vector<1x64xf32> to vector<16x64xf32>
    %45 = arith.mulf %42, %44 : vector<16x64xf32>
    %c0_56 = arith.constant 0 : index
    %c0_57 = arith.constant 0 : index
    %46 = vector.load %arg8[%c0_56, %c0_57] : memref<1x64xf32, #tpu.memory_space<vmem>>, vector<1x64xf32>
    %47 = vector.broadcast %46 : vector<1x64xf32> to vector<16x64xf32>
    %48 = arith.addf %45, %47 : vector<16x64xf32>
    %cst_58 = arith.constant 0.000000e+00 : f32
    %49 = vector.broadcast %cst_58 : f32 to vector<16x64xf32>
    %50 = arith.maximumf %48, %49 : vector<16x64xf32>
    %cst_59 = arith.constant 0.000000e+00 : f32
    %51 = vector.broadcast %cst_59 : f32 to vector<18x64xf32>
    %c0_60 = arith.constant 0 : index
    %c0_61 = arith.constant 0 : index
    %52 = vector.load %arg15[%c0_60, %c0_61] : memref<18x64xf32, #tpu.memory_space<vmem>>, vector<18x64xf32>
    tpu.vector_store %arg15[%c0_60, %c0_61], %51 {strides = array<i32>} : memref<18x64xf32, #tpu.memory_space<vmem>>, vector<18x64xf32>,
    %c1_62 = arith.constant 1 : index
    %c0_63 = arith.constant 0 : index
    %53 = vector.load %arg15[%c1_62, %c0_63] : memref<18x64xf32, #tpu.memory_space<vmem>>, vector<16x64xf32>
    tpu.vector_store %arg15[%c1_62, %c0_63], %50 {strides = array<i32>} : memref<18x64xf32, #tpu.memory_space<vmem>>, vector<16x64xf32>,
    %c0_64 = arith.constant 0 : index
    %c0_65 = arith.constant 0 : index
    %54 = vector.load %arg15[%c0_64, %c0_65] : memref<18x64xf32, #tpu.memory_space<vmem>>, vector<16x64xf32>
    %c0_66 = arith.constant 0 : index
    %c0_67 = arith.constant 0 : index
    %c0_68 = arith.constant 0 : index
    %55 = vector.load %arg9[%c0_66, %c0_67, %c0_68] : memref<3x64x64xf32, #tpu.memory_space<vmem>>, vector<1x64x64xf32>
    %56 = vector.shape_cast %55 : vector<1x64x64xf32> to vector<64x64xf32>
    %cst_69 = arith.constant dense<0.000000e+00> : vector<16x64xf32>
    %57 = tpu.matmul %54, %56, %cst_69 {dimension_numbers = #tpu.dot_dimension_numbers<[1], [0], [0], [1], [0, 0, 1, 1], [], []>} : vector<16x64xf32>, vector<64x64xf32>, vector<16x64xf32> -> vector<16x64xf32>
    %c1_70 = arith.constant 1 : index
    %c0_71 = arith.constant 0 : index
    %58 = vector.load %arg15[%c1_70, %c0_71] : memref<18x64xf32, #tpu.memory_space<vmem>>, vector<16x64xf32>
    %c1_72 = arith.constant 1 : index
    %c0_73 = arith.constant 0 : index
    %c0_74 = arith.constant 0 : index
    %59 = vector.load %arg9[%c1_72, %c0_73, %c0_74] : memref<3x64x64xf32, #tpu.memory_space<vmem>>, vector<1x64x64xf32>
    %60 = vector.shape_cast %59 : vector<1x64x64xf32> to vector<64x64xf32>
    %cst_75 = arith.constant dense<0.000000e+00> : vector<16x64xf32>
    %61 = tpu.matmul %58, %60, %cst_75 {dimension_numbers = #tpu.dot_dimension_numbers<[1], [0], [0], [1], [0, 0, 1, 1], [], []>} : vector<16x64xf32>, vector<64x64xf32>, vector<16x64xf32> -> vector<16x64xf32>
    %62 = arith.addf %57, %61 : vector<16x64xf32>
    %c2_76 = arith.constant 2 : index
    %c0_77 = arith.constant 0 : index
    %63 = vector.load %arg15[%c2_76, %c0_77] : memref<18x64xf32, #tpu.memory_space<vmem>>, vector<16x64xf32>
    %c2_78 = arith.constant 2 : index
    %c0_79 = arith.constant 0 : index
    %c0_80 = arith.constant 0 : index
    %64 = vector.load %arg9[%c2_78, %c0_79, %c0_80] : memref<3x64x64xf32, #tpu.memory_space<vmem>>, vector<1x64x64xf32>
    %65 = vector.shape_cast %64 : vector<1x64x64xf32> to vector<64x64xf32>
    %cst_81 = arith.constant dense<0.000000e+00> : vector<16x64xf32>
    %66 = tpu.matmul %63, %65, %cst_81 {dimension_numbers = #tpu.dot_dimension_numbers<[1], [0], [0], [1], [0, 0, 1, 1], [], []>} : vector<16x64xf32>, vector<64x64xf32>, vector<16x64xf32> -> vector<16x64xf32>
    %67 = arith.addf %62, %66 : vector<16x64xf32>
    %c0_82 = arith.constant 0 : index
    %c0_83 = arith.constant 0 : index
    %68 = vector.load %arg10[%c0_82, %c0_83] : memref<1x64xf32, #tpu.memory_space<vmem>>, vector<1x64xf32>
    %69 = vector.broadcast %68 : vector<1x64xf32> to vector<16x64xf32>
    %70 = arith.mulf %67, %69 : vector<16x64xf32>
    %c0_84 = arith.constant 0 : index
    %c0_85 = arith.constant 0 : index
    %71 = vector.load %arg11[%c0_84, %c0_85] : memref<1x64xf32, #tpu.memory_space<vmem>>, vector<1x64xf32>
    %72 = vector.broadcast %71 : vector<1x64xf32> to vector<16x64xf32>
    %73 = arith.addf %70, %72 : vector<16x64xf32>
    %cst_86 = arith.constant 0.000000e+00 : f32
    %74 = vector.broadcast %cst_86 : f32 to vector<16x64xf32>
    %75 = arith.maximumf %73, %74 : vector<16x64xf32>
    %c0_87 = arith.constant 0 : index
    %c0_88 = arith.constant 0 : index
    %c0_89 = arith.constant 0 : index
    %76 = vector.load %arg12[%c0_87, %c0_88, %c0_89] : memref<1x16x64xf32, #tpu.memory_space<vmem>>, vector<1x16x64xf32>
    %77 = vector.shape_cast %76 : vector<1x16x64xf32> to vector<16x64xf32>
    %78 = vector.shape_cast %75 : vector<16x64xf32> to vector<1x16x64xf32>
    tpu.vector_store %arg12[%c0_87, %c0_88, %c0_89], %78 {strides = array<i32>} : memref<1x16x64xf32, #tpu.memory_space<vmem>>, vector<1x16x64xf32>,
    return
  }
  func.func @transform_0(%arg0: i32) -> (i32, i32, i32) {
    %c0_i32 = arith.constant 0 : i32
    %c0_i32_0 = arith.constant 0 : i32
    %c0_i32_1 = arith.constant 0 : i32
    return %arg0, %c0_i32, %c0_i32_0 : i32, i32, i32
  }
  func.func @transform_1(%arg0: i32) -> (i32, i32, i32) {
    %c0_i32 = arith.constant 0 : i32
    %c0_i32_0 = arith.constant 0 : i32
    %c0_i32_1 = arith.constant 0 : i32
    return %arg0, %c0_i32, %c0_i32_0 : i32, i32, i32
  }
  func.func @transform_2(%arg0: i32) -> (i32, i32) {
    %c0_i32 = arith.constant 0 : i32
    %c0_i32_0 = arith.constant 0 : i32
    %c0_i32_1 = arith.constant 0 : i32
    return %c0_i32, %c0_i32_0 : i32, i32
  }
  func.func @transform_3(%arg0: i32) -> (i32, i32) {
    %c0_i32 = arith.constant 0 : i32
    %c0_i32_0 = arith.constant 0 : i32
    %c0_i32_1 = arith.constant 0 : i32
    return %c0_i32, %c0_i32_0 : i32, i32
  }
  func.func @transform_4(%arg0: i32) -> (i32, i32, i32) {
    %c0_i32 = arith.constant 0 : i32
    %c0_i32_0 = arith.constant 0 : i32
    %c0_i32_1 = arith.constant 0 : i32
    %c0_i32_2 = arith.constant 0 : i32
    return %c0_i32, %c0_i32_0, %c0_i32_1 : i32, i32, i32
  }
  func.func @transform_5(%arg0: i32) -> (i32, i32, i32) {
    %c0_i32 = arith.constant 0 : i32
    %c0_i32_0 = arith.constant 0 : i32
    %c0_i32_1 = arith.constant 0 : i32
    %c0_i32_2 = arith.constant 0 : i32
    return %c0_i32, %c0_i32_0, %c0_i32_1 : i32, i32, i32
  }
  func.func @transform_6(%arg0: i32) -> (i32, i32) {
    %c0_i32 = arith.constant 0 : i32
    %c0_i32_0 = arith.constant 0 : i32
    %c0_i32_1 = arith.constant 0 : i32
    return %c0_i32, %c0_i32_0 : i32, i32
  }
  func.func @transform_7(%arg0: i32) -> (i32, i32) {
    %c0_i32 = arith.constant 0 : i32
    %c0_i32_0 = arith.constant 0 : i32
    %c0_i32_1 = arith.constant 0 : i32
    return %c0_i32, %c0_i32_0 : i32, i32
  }
  func.func @transform_8(%arg0: i32) -> (i32, i32, i32) {
    %c0_i32 = arith.constant 0 : i32
    %c0_i32_0 = arith.constant 0 : i32
    %c0_i32_1 = arith.constant 0 : i32
    %c0_i32_2 = arith.constant 0 : i32
    return %c0_i32, %c0_i32_0, %c0_i32_1 : i32, i32, i32
  }
  func.func @transform_9(%arg0: i32) -> (i32, i32) {
    %c0_i32 = arith.constant 0 : i32
    %c0_i32_0 = arith.constant 0 : i32
    %c0_i32_1 = arith.constant 0 : i32
    return %c0_i32, %c0_i32_0 : i32, i32
  }
  func.func @transform_10(%arg0: i32) -> (i32, i32) {
    %c0_i32 = arith.constant 0 : i32
    %c0_i32_0 = arith.constant 0 : i32
    %c0_i32_1 = arith.constant 0 : i32
    return %c0_i32, %c0_i32_0 : i32, i32
  }
  func.func @transform_11(%arg0: i32) -> (i32, i32, i32) {
    %c0_i32 = arith.constant 0 : i32
    %c0_i32_0 = arith.constant 0 : i32
    %c0_i32_1 = arith.constant 0 : i32
    return %arg0, %c0_i32, %c0_i32_0 : i32, i32, i32
  }
}

</mosaic_0001>

<llo_original>
// kernel: up_forward.1
$region0: #{up_forward.1}
  #allocation0 [shape = 'u32[]', space=smem, size = 0x4, offset = 0x4, fixed_abs, tag = 'smem constant byte address 0x4 - core index']
  #allocation1 [shape = 'u32[144,128]{1,0:T(1,128)}', space=vmem, size = 0x12000, scoped, tag = 'internal scratch']
  #allocation2 [shape = 'f32[18,64]{1,0:T(8,128)}', space=vmem, size = 0x3000, scoped, tag = 'scratch operand']
  #allocation3 [shape = 'f32[18,64]{1,0:T(8,128)}', space=vmem, size = 0x3000, scoped, tag = 'scratch operand']
  #allocation4 [shape = 'f32[18,64]{1,0:T(8,128)}', space=vmem, size = 0x3000, scoped, tag = 'scratch operand']
  %s0 = inlined_call_operand.vmem [shape: f32[2,8,32], index: 0, kind: input, shape index: {}]
  %s1 = inlined_call_operand.vmem [shape: f32[2,16,64], index: 1, kind: input, shape index: {}]
  %s2 = inlined_call_operand.vmem [shape: f32[16,8], index: 2, kind: input, shape index: {}]
  %s3 = inlined_call_operand.vmem [shape: f32[32,64], index: 3, kind: input, shape index: {}]
  %s4 = inlined_call_operand.vmem [shape: f32[3,64,64], index: 4, kind: input, shape index: {}]
  %s5 = inlined_call_operand.vmem [shape: f32[3,64,64], index: 5, kind: input, shape index: {}]
  %s6 = inlined_call_operand.vmem [shape: f32[1,64], index: 6, kind: input, shape index: {}]
  %s7 = inlined_call_operand.vmem [shape: f32[1,64], index: 7, kind: input, shape index: {}]
  %s8 = inlined_call_operand.vmem [shape: f32[3,64,64], index: 8, kind: input, shape index: {}]
  %s9 = inlined_call_operand.vmem [shape: f32[1,64], index: 9, kind: input, shape index: {}]
  %s10 = inlined_call_operand.vmem [shape: f32[1,64], index: 10, kind: input, shape index: {}]
  %s11 = inlined_call_operand.vmem [shape: f32[2,16,64], index: 11, kind: output, shape index: {}]
  %s12 = sld [smem:[#allocation0]]
  $region77: #{up_forward.1} parent=0
    _
  %s14 = ssub.s32 1, %s12
  %s15 = scalar_select 0, %s14, %s12
  loop: start=0, step=1, limit=4
  $region2: #{up_forward.1} parent=0 // loop_pre_header
    _
  $region3: #{up_forward.1} parent=0 // loop_header
    %s17 = sphi 0, %s21
    %p18 = scmp.ge.s32.totalorder %s17, 4
    %s27 = sphi 0, %s29
    %s30 = sphi 0, %s27
    %s31 = sphi 0, %s30
    %s47 = sphi 0, %s31
    %s53 = sphi 0, %s55
    %s56 = sphi 0, %s53
    %s57 = sphi 0, %s56
    %s73 = sphi 0, %s57
    %s77 = sphi 0, %s77
    %s79 = sphi 0, %s77
    %s80 = sphi 0, %s79
    %s94 = sphi 0, %s80
    %s98 = sphi 0, %s98
    %s100 = sphi 0, %s98
    %s101 = sphi 0, %s100
    %s115 = sphi 0, %s101
    %s119 = sphi 0, %s119
    %s121 = sphi 0, %s119
    %s122 = sphi 0, %s121
    %s136 = sphi 0, %s122
    %s140 = sphi 0, %s140
    %s142 = sphi 0, %s140
    %s143 = sphi 0, %s142
    %s157 = sphi 0, %s143
    %s161 = sphi 0, %s161
    %s163 = sphi 0, %s161
    %s164 = sphi 0, %s163
    %s178 = sphi 0, %s164
    %s182 = sphi 0, %s182
    %s184 = sphi 0, %s182
    %s185 = sphi 0, %s184
    %s199 = sphi 0, %s185
    %s203 = sphi 0, %s203
    %s205 = sphi 0, %s203
    %s206 = sphi 0, %s205
    %s220 = sphi 0, %s206
    %s224 = sphi 0, %s224
    %s226 = sphi 0, %s224
    %s227 = sphi 0, %s226
    %s241 = sphi 0, %s227
    %s245 = sphi 0, %s245
    %s247 = sphi 0, %s245
    %s248 = sphi 0, %s247
    %s262 = sphi 0, %s248
    %s268 = sphi 0, %s270
    %s271 = sphi 0, %s268
    %s272 = sphi 0, %s271
    %s288 = sphi 0, %s272
  $region4: #{up_forward.1} parent=0 // loop_header_branch
    %20 = sbr.rel (%p18) target = $region8
  $region5: #{up_forward.1} parent=0 // loop_body
    %s22 = ssub.s32 %s17, 1
    %s23 = ssub.s32 %s17, 2
    %s24 = sadd.s32 %s17, 1
    %s25 = ssub.s32 %s17, %s24
    %p26 = scmp.eq.s32.totalorder %s25, 0
    %s28 = sadd.s32 %s27, 1
    %s29 = scalar_select %p26, %s27, %s28
    %p32 = pneg %p26
    %p33 = scmp.eq.s32.totalorder %s17, 1
    %p34 = por %p32, %p33
    %p35 = scmp.ne.s32.totalorder %s27, %s30
    %p36 = scmp.eq.s32.totalorder %s17, 0
    %p37 = por %p35, %p36
    %p38 = scmp.ne.s32.totalorder %s27, %s30
    %p39 = scmp.eq.s32.totalorder %s22, 1
    %p40 = por %p38, %p39
    %p41 = scmp.ne.s32.totalorder %s30, %s31
    %p42 = scmp.eq.s32.totalorder %s22, 0
    %p43 = por %p41, %p42
    %p44 = scmp.ne.s32.totalorder %s30, %s31
    %p45 = scmp.eq.s32.totalorder %s23, 1
    %p46 = por %p44, %p45
    %p48 = scmp.ne.s32.totalorder %s31, %s47
    %p49 = scmp.eq.s32.totalorder %s23, 0
    %p50 = por %p48, %p49
    %s51 = ssub.s32 %s17, %s24
    %p52 = scmp.eq.s32.totalorder %s51, 0
    %s54 = sadd.s32 %s53, 1
    %s55 = scalar_select %p52, %s53, %s54
    %p58 = pneg %p52
    %p59 = scmp.eq.s32.totalorder %s17, 1
    %p60 = por %p58, %p59
    %p61 = scmp.ne.s32.totalorder %s53, %s56
    %p62 = scmp.eq.s32.totalorder %s17, 0
    %p63 = por %p61, %p62
    %p64 = scmp.ne.s32.totalorder %s53, %s56
    %p65 = scmp.eq.s32.totalorder %s22, 1
    %p66 = por %p64, %p65
    %p67 = scmp.ne.s32.totalorder %s56, %s57
    %p68 = scmp.eq.s32.totalorder %s22, 0
    %p69 = por %p67, %p68
    %p70 = scmp.ne.s32.totalorder %s56, %s57
    %p71 = scmp.eq.s32.totalorder %s23, 1
    %p72 = por %p70, %p71
    %p74 = scmp.ne.s32.totalorder %s57, %s73
    %p75 = scmp.eq.s32.totalorder %s23, 0
    %p76 = por %p74, %p75
    %s78 = sadd.s32 %s77, 1
    %p81 = scmp.eq.s32.totalorder %s17, 1
    %p82 = scmp.ne.s32.totalorder %s77, %s79
    %p83 = scmp.eq.s32.totalorder %s17, 0
    %p84 = por %p82, %p83
    %p85 = scmp.ne.s32.totalorder %s77, %s79
    %p86 = scmp.eq.s32.totalorder %s22, 1
    %p87 = por %p85, %p86
    %p88 = scmp.ne.s32.totalorder %s79, %s80
    %p89 = scmp.eq.s32.totalorder %s22, 0
    %p90 = por %p88, %p89
    %p91 = scmp.ne.s32.totalorder %s79, %s80
    %p92 = scmp.eq.s32.totalorder %s23, 1
    %p93 = por %p91, %p92
    %p95 = scmp.ne.s32.totalorder %s80, %s94
    %p96 = scmp.eq.s32.totalorder %s23, 0
    %p97 = por %p95, %p96
    %s99 = sadd.s32 %s98, 1
    %p102 = scmp.eq.s32.totalorder %s17, 1
    %p103 = scmp.ne.s32.totalorder %s98, %s100
    %p104 = scmp.eq.s32.totalorder %s17, 0
    %p105 = por %p103, %p104
    %p106 = scmp.ne.s32.totalorder %s98, %s100
    %p107 = scmp.eq.s32.totalorder %s22, 1
    %p108 = por %p106, %p107
    %p109 = scmp.ne.s32.totalorder %s100, %s101
    %p110 = scmp.eq.s32.totalorder %s22, 0
    %p111 = por %p109, %p110
    %p112 = scmp.ne.s32.totalorder %s100, %s101
    %p113 = scmp.eq.s32.totalorder %s23, 1
    %p114 = por %p112, %p113
    %p116 = scmp.ne.s32.totalorder %s101, %s115
    %p117 = scmp.eq.s32.totalorder %s23, 0
    %p118 = por %p116, %p117
    %s120 = sadd.s32 %s119, 1
    %p123 = scmp.eq.s32.totalorder %s17, 1
    %p124 = scmp.ne.s32.totalorder %s119, %s121
    %p125 = scmp.eq.s32.totalorder %s17, 0
    %p126 = por %p124, %p125
    %p127 = scmp.ne.s32.totalorder %s119, %s121
    %p128 = scmp.eq.s32.totalorder %s22, 1
    %p129 = por %p127, %p128
    %p130 = scmp.ne.s32.totalorder %s121, %s122
    %p131 = scmp.eq.s32.totalorder %s22, 0
    %p132 = por %p130, %p131
    %p133 = scmp.ne.s32.totalorder %s121, %s122
    %p134 = scmp.eq.s32.totalorder %s23, 1
    %p135 = por %p133, %p134
    %p137 = scmp.ne.s32.totalorder %s122, %s136
    %p138 = scmp.eq.s32.totalorder %s23, 0
    %p139 = por %p137, %p138
    %s141 = sadd.s32 %s140, 1
    %p144 = scmp.eq.s32.totalorder %s17, 1
    %p145 = scmp.ne.s32.totalorder %s140, %s142
    %p146 = scmp.eq.s32.totalorder %s17, 0
    %p147 = por %p145, %p146
    %p148 = scmp.ne.s32.totalorder %s140, %s142
    %p149 = scmp.eq.s32.totalorder %s22, 1
    %p150 = por %p148, %p149
    %p151 = scmp.ne.s32.totalorder %s142, %s143
    %p152 = scmp.eq.s32.totalorder %s22, 0
    %p153 = por %p151, %p152
    %p154 = scmp.ne.s32.totalorder %s142, %s143
    %p155 = scmp.eq.s32.totalorder %s23, 1
    %p156 = por %p154, %p155
    %p158 = scmp.ne.s32.totalorder %s143, %s157
    %p159 = scmp.eq.s32.totalorder %s23, 0
    %p160 = por %p158, %p159
    %s162 = sadd.s32 %s161, 1
    %p165 = scmp.eq.s32.totalorder %s17, 1
    %p166 = scmp.ne.s32.totalorder %s161, %s163
    %p167 = scmp.eq.s32.totalorder %s17, 0
    %p168 = por %p166, %p167
    %p169 = scmp.ne.s32.totalorder %s161, %s163
    %p170 = scmp.eq.s32.totalorder %s22, 1
    %p171 = por %p169, %p170
    %p172 = scmp.ne.s32.totalorder %s163, %s164
    %p173 = scmp.eq.s32.totalorder %s22, 0
    %p174 = por %p172, %p173
    %p175 = scmp.ne.s32.totalorder %s163, %s164
    %p176 = scmp.eq.s32.totalorder %s23, 1
    %p177 = por %p175, %p176
    %p179 = scmp.ne.s32.totalorder %s164, %s178
    %p180 = scmp.eq.s32.totalorder %s23, 0
    %p181 = por %p179, %p180
    %s183 = sadd.s32 %s182, 1
    %p186 = scmp.eq.s32.totalorder %s17, 1
    %p187 = scmp.ne.s32.totalorder %s182, %s184
    %p188 = scmp.eq.s32.totalorder %s17, 0
    %p189 = por %p187, %p188
    %p190 = scmp.ne.s32.totalorder %s182, %s184
    %p191 = scmp.eq.s32.totalorder %s22, 1
    %p192 = por %p190, %p191
    %p193 = scmp.ne.s32.totalorder %s184, %s185
    %p194 = scmp.eq.s32.totalorder %s22, 0
    %p195 = por %p193, %p194
    %p196 = scmp.ne.s32.totalorder %s184, %s185
    %p197 = scmp.eq.s32.totalorder %s23, 1
    %p198 = por %p196, %p197
    %p200 = scmp.ne.s32.totalorder %s185, %s199
    %p201 = scmp.eq.s32.totalorder %s23, 0
    %p202 = por %p200, %p201
    %s204 = sadd.s32 %s203, 1
    %p207 = scmp.eq.s32.totalorder %s17, 1
    %p208 = scmp.ne.s32.totalorder %s203, %s205
    %p209 = scmp.eq.s32.totalorder %s17, 0
    %p210 = por %p208, %p209
    %p211 = scmp.ne.s32.totalorder %s203, %s205
    %p212 = scmp.eq.s32.totalorder %s22, 1
    %p213 = por %p211, %p212
    %p214 = scmp.ne.s32.totalorder %s205, %s206
    %p215 = scmp.eq.s32.totalorder %s22, 0
    %p216 = por %p214, %p215
    %p217 = scmp.ne.s32.totalorder %s205, %s206
    %p218 = scmp.eq.s32.totalorder %s23, 1
    %p219 = por %p217, %p218
    %p221 = scmp.ne.s32.totalorder %s206, %s220
    %p222 = scmp.eq.s32.totalorder %s23, 0
    %p223 = por %p221, %p222
    %s225 = sadd.s32 %s224, 1
    %p228 = scmp.eq.s32.totalorder %s17, 1
    %p229 = scmp.ne.s32.totalorder %s224, %s226
    %p230 = scmp.eq.s32.totalorder %s17, 0
    %p231 = por %p229, %p230
    %p232 = scmp.ne.s32.totalorder %s224, %s226
    %p233 = scmp.eq.s32.totalorder %s22, 1
    %p234 = por %p232, %p233
    %p235 = scmp.ne.s32.totalorder %s226, %s227
    %p236 = scmp.eq.s32.totalorder %s22, 0
    %p237 = por %p235, %p236
    %p238 = scmp.ne.s32.totalorder %s226, %s227
    %p239 = scmp.eq.s32.totalorder %s23, 1
    %p240 = por %p238, %p239
    %p242 = scmp.ne.s32.totalorder %s227, %s241
    %p243 = scmp.eq.s32.totalorder %s23, 0
    %p244 = por %p242, %p243
    %s246 = sadd.s32 %s245, 1
    %p249 = scmp.eq.s32.totalorder %s17, 1
    %p250 = scmp.ne.s32.totalorder %s245, %s247
    %p251 = scmp.eq.s32.totalorder %s17, 0
    %p252 = por %p250, %p251
    %p253 = scmp.ne.s32.totalorder %s245, %s247
    %p254 = scmp.eq.s32.totalorder %s22, 1
    %p255 = por %p253, %p254
    %p256 = scmp.ne.s32.totalorder %s247, %s248
    %p257 = scmp.eq.s32.totalorder %s22, 0
    %p258 = por %p256, %p257
    %p259 = scmp.ne.s32.totalorder %s247, %s248
    %p260 = scmp.eq.s32.totalorder %s23, 1
    %p261 = por %p259, %p260
    %p263 = scmp.ne.s32.totalorder %s248, %s262
    %p264 = scmp.eq.s32.totalorder %s23, 0
    %p265 = por %p263, %p264
    %s266 = ssub.s32 %s17, %s24
    %p267 = scmp.eq.s32.totalorder %s266, 0
    %s269 = sadd.s32 %s268, 1
    %s270 = scalar_select %p267, %s268, %s269
    %p273 = pneg %p267
    %p274 = scmp.eq.s32.totalorder %s17, 1
    %p275 = por %p273, %p274
    %p276 = scmp.ne.s32.totalorder %s268, %s271
    %p277 = scmp.eq.s32.totalorder %s17, 0
    %p278 = por %p276, %p277
    %p279 = scmp.ne.s32.totalorder %s268, %s271
    %p280 = scmp.eq.s32.totalorder %s22, 1
    %p281 = por %p279, %p280
    %p282 = scmp.ne.s32.totalorder %s271, %s272
    %p283 = scmp.eq.s32.totalorder %s22, 0
    %p284 = por %p282, %p283
    %p285 = scmp.ne.s32.totalorder %s271, %s272
    %p286 = scmp.eq.s32.totalorder %s23, 1
    %p287 = por %p285, %p286
    %p289 = scmp.ne.s32.totalorder %s272, %s288
    %p290 = scmp.eq.s32.totalorder %s23, 0
    %p291 = por %p289, %p290
    %p292 = scmp.le.s32.totalorder 1, %s17
    %p293 = scmp.lt.s32.totalorder %s17, 3
    %p294 = pnand %p292, %p293
    %p295 = pneg %p294
    // Predicated region
    $region9: #{up_forward.1} parent=5 // pred_check
      _
    $region10: #{up_forward.1} parent=5 // pred_check_branch
      %297 = sbr.rel (%p294) target = $region12
    $region11: #{up_forward.1} parent=5 // pred_region
      %s298 = ssub.s32 %s17, 1
      // Predicated region
      $region13: #{up_forward.1} parent=11 // pred_check
        %p299 = pneg %p90
      $region14: #{up_forward.1} parent=11 // pred_check_branch
        %301 = sbr.rel (%p299) target = $region16
      $region15: #{up_forward.1} parent=11 // pred_region
        _
      $region16: #{up_forward.1} parent=11 // pred_fallthru
        _
      // Predicated region
      $region17: #{up_forward.1} parent=11 // pred_check
        %p302 = pneg %p111
      $region18: #{up_forward.1} parent=11 // pred_check_branch
        %304 = sbr.rel (%p302) target = $region20
      $region19: #{up_forward.1} parent=11 // pred_region
        _
      $region20: #{up_forward.1} parent=11 // pred_fallthru
        _
      // Predicated region
      $region21: #{up_forward.1} parent=11 // pred_check
        %p305 = pneg %p132
      $region22: #{up_forward.1} parent=11 // pred_check_branch
        %307 = sbr.rel (%p305) target = $region24
      $region23: #{up_forward.1} parent=11 // pred_region
        _
      $region24: #{up_forward.1} parent=11 // pred_fallthru
        _
      // Predicated region
      $region25: #{up_forward.1} parent=11 // pred_check
        %p308 = pneg %p153
      $region26: #{up_forward.1} parent=11 // pred_check_branch
        %310 = sbr.rel (%p308) target = $region28
      $region27: #{up_forward.1} parent=11 // pred_region
        _
      $region28: #{up_forward.1} parent=11 // pred_fallthru
        _
      // Predicated region
      $region29: #{up_forward.1} parent=11 // pred_check
        %p311 = pneg %p174
      $region30: #{up_forward.1} parent=11 // pred_check_branch
        %313 = sbr.rel (%p311) target = $region32
      $region31: #{up_forward.1} parent=11 // pred_region
        _
      $region32: #{up_forward.1} parent=11 // pred_fallthru
        _
      // Predicated region
      $region33: #{up_forward.1} parent=11 // pred_check
        %p314 = pneg %p195
      $region34: #{up_forward.1} parent=11 // pred_check_branch
        %316 = sbr.rel (%p314) target = $region36
      $region35: #{up_forward.1} parent=11 // pred_region
        _
      $region36: #{up_forward.1} parent=11 // pred_fallthru
        _
      // Predicated region
      $region37: #{up_forward.1} parent=11 // pred_check
        %p317 = pneg %p216
      $region38: #{up_forward.1} parent=11 // pred_check_branch
        %319 = sbr.rel (%p317) target = $region40
      $region39: #{up_forward.1} parent=11 // pred_region
        _
      $region40: #{up_forward.1} parent=11 // pred_fallthru
        _
      // Predicated region
      $region41: #{up_forward.1} parent=11 // pred_check
        %p320 = pneg %p237
      $region42: #{up_forward.1} parent=11 // pred_check_branch
        %322 = sbr.rel (%p320) target = $region44
      $region43: #{up_forward.1} parent=11 // pred_region
        _
      $region44: #{up_forward.1} parent=11 // pred_fallthru
        _
      // Predicated region
      $region45: #{up_forward.1} parent=11 // pred_check
        %p323 = pneg %p258
      $region46: #{up_forward.1} parent=11 // pred_check_branch
        %325 = sbr.rel (%p323) target = $region48
      $region47: #{up_forward.1} parent=11 // pred_region
        _
      $region48: #{up_forward.1} parent=11 // pred_fallthru
        _
    $region12: #{up_forward.1} parent=5 // pred_fallthru
      _
    %p326 = scmp.lt.s32.totalorder %s17, 2
    // Predicated region
    $region49: #{up_forward.1} parent=5 // pred_check
      %p327 = pneg %p326
    $region50: #{up_forward.1} parent=5 // pred_check_branch
      %329 = sbr.rel (%p327) target = $region52
    $region51: #{up_forward.1} parent=5 // pred_region
      // Predicated region
      $region53: #{up_forward.1} parent=51 // pred_check
        %p330 = pneg %p37
      $region54: #{up_forward.1} parent=51 // pred_check_branch
        %332 = sbr.rel (%p330) target = $region56
      $region55: #{up_forward.1} parent=51 // pred_region
        %p333 = scmp.lt.s32.totalorder %s17, 1
        %s334 = scalar_select %p333, %s17, 1
        %s335 = smul.addr %s334, 8
        %s336 = scalar_lea.vmem %s0, %s335
      $region56: #{up_forward.1} parent=51 // pred_fallthru
        _
      // Predicated region
      $region57: #{up_forward.1} parent=51 // pred_check
        %p337 = pneg %p63
      $region58: #{up_forward.1} parent=51 // pred_check_branch
        %339 = sbr.rel (%p337) target = $region60
      $region59: #{up_forward.1} parent=51 // pred_region
        %p340 = scmp.lt.s32.totalorder %s17, 1
        %s341 = scalar_select %p340, %s17, 1
        %s342 = smul.addr %s341, 2
        %s343 = smul.addr %s342, 8
        %s344 = scalar_lea.vmem %s1, %s343
      $region60: #{up_forward.1} parent=51 // pred_fallthru
        _
    $region52: #{up_forward.1} parent=5 // pred_fallthru
      _
    %p345 = scmp.le.s32.totalorder 1, %s17
    %p346 = scmp.lt.s32.totalorder %s17, 3
    %p347 = pnand %p345, %p346
    %p348 = pneg %p347
    // Predicated region
    $region61: #{up_forward.1} parent=5 // pred_check
      _
    $region62: #{up_forward.1} parent=5 // pred_check_branch
      %350 = sbr.rel (%p347) target = $region64
    $region63: #{up_forward.1} parent=5 // pred_region
      %s351 = ssub.s32 %s17, 1
      %p352 = scmp.lt.s32.totalorder %s22, 1
      %s353 = scalar_select %p352, %s22, 1
      %s354 = smul.addr %s353, 8
      %s355 = scalar_lea.vmem %s0, %s354
      %p356 = pneg %p43
      %p357 = pneg %p40
      %p358 = scmp.lt.s32.totalorder %s22, 1
      %s359 = scalar_select %p358, %s22, 1
      %s360 = smul.addr %s359, 2
      %s361 = smul.addr %s360, 8
      %s362 = scalar_lea.vmem %s1, %s361
      %p363 = pneg %p69
      %p364 = pneg %p66
      %p365 = pneg %p90
      %p366 = pneg %p87
      %p367 = pneg %p111
      %p368 = pneg %p108
      %p369 = pneg %p132
      %p370 = pneg %p129
      %p371 = pneg %p153
      %p372 = pneg %p150
      %p373 = pneg %p174
      %p374 = pneg %p171
      %p375 = pneg %p195
      %p376 = pneg %p192
      %p377 = pneg %p216
      %p378 = pneg %p213
      %p379 = pneg %p237
      %p380 = pneg %p234
      %p381 = pneg %p258
      %p382 = pneg %p255
      %p383 = pneg %p284
      %p384 = pneg %p281
      %p385 = scmp.lt.s32.totalorder %s22, 1
      %s386 = scalar_select %p385, %s22, 1
      %s387 = smul.addr %s386, 2
      %s388 = smul.addr %s387, 8
      %s389 = scalar_lea.vmem %s11, %s388
      %p390 = scmp.lt.s32.totalorder %s22, 1
      %s391 = scalar_select %p390, %s22, 1
      %s392 = smul.addr %s391, 8
      %s393 = scalar_lea.vmem %s0, %s392
      %p394 = scmp.lt.s32.totalorder %s22, 1
      %s395 = scalar_select %p394, %s22, 1
      %s396 = smul.addr %s395, 2
      %s397 = smul.addr %s396, 8
      %s398 = scalar_lea.vmem %s1, %s397
      %p399 = scmp.lt.s32.totalorder %s22, 1
      %s400 = scalar_select %p399, %s22, 1
      %s401 = smul.addr %s400, 2
      %s402 = smul.addr %s401, 8
      %s403 = scalar_lea.vmem %s11, %s402
      %v404 = vld [vmem:[%s2] sm:$0xff]
      %v405 = vld [vmem:[%s2 + $0x8] sm:$0xff]
      %v406 = vld [vmem:[%s393] sm:$0xff]
      %vm407 = vcmask 64512
      %v409 = vsel %vm407, %v404, 0
      %v412 = vsel %vm407, %v405, 0
      %414 = vmatprep.subr.mxu0 0.0
      %415 = vmatpush1.msra.mxu0 %v406
      %416 = vmatprep.subr.mxu0 0.0
      %417 = vmatpush1.msra.mxu0 0.0
      %418 = vmatprep.subr.mxu0 0.0
      %419 = vmatpush1.msra.mxu0 0.0
      %420 = vmatprep.subr.mxu0 0.0
      %421 = vmatpush1.msra.mxu0 0.0
      %422 = vmatprep.subr.mxu0 0.0
      %423 = vmatpush1.msra.mxu0 0.0
      %424 = vmatprep.subr.mxu0 0.0
      %425 = vmatpush1.msra.mxu0 0.0
      %426 = vmatprep.subr.mxu0 0.0
      %427 = vmatpush1.msra.mxu0 0.0
      %428 = vmatprep.subr.mxu0 0.0
      %429 = vmatpush1.msra.mxu0 0.0
      %430 = vmatprep.subr.mxu0 0.0
      %431 = vmatpush1.msra.mxu0 0.0
      %432 = vmatprep.subr.mxu0 0.0
      %433 = vmatpush1.msra.mxu0 0.0
      %434 = vmatprep.subr.mxu0 0.0
      %435 = vmatpush1.msra.mxu0 0.0
      %436 = vmatprep.subr.mxu0 0.0
      %437 = vmatpush1.msra.mxu0 0.0
      %438 = vmatprep.subr.mxu0 0.0
      %439 = vmatpush1.msra.mxu0 0.0
      %440 = vmatprep.subr.mxu0 0.0
      %441 = vmatpush1.msra.mxu0 0.0
      %442 = vmatprep.subr.mxu0 0.0
      %443 = vmatpush1.msra.mxu0 0.0
      %444 = vmatprep.subr.mxu0 0.0
      %445 = vmatpush1.msra.mxu0 0.0
      %446 = vmatprep.subr.mxu0 0.0
      %447 = vmatpush1.msra.mxu0 0.0
      %448 = vmatprep.subr.mxu0 0.0
      %449 = vmatpush1.msra.mxu0 0.0
      %450 = vmatprep.subr.mxu0 0.0
      %451 = vmatpush1.msra.mxu0 0.0
      %452 = vmatprep.subr.mxu0 0.0
      %453 = vmatpush1.msra.mxu0 0.0
      %454 = vmatprep.subr.mxu0 0.0
      %455 = vmatpush1.msra.mxu0 0.0
      %456 = vmatprep.subr.mxu0 0.0
      %457 = vmatpush1.msra.mxu0 0.0
      %458 = vmatprep.subr.mxu0 0.0
      %459 = vmatpush1.msra.mxu0 0.0
      %460 = vmatprep.subr.mxu0 0.0
      %461 = vmatpush1.msra.mxu0 0.0
      %462 = vmatprep.subr.mxu0 0.0
      %463 = vmatpush1.msra.mxu0 0.0
      %464 = vmatprep.subr.mxu0 0.0
      %465 = vmatpush1.msra.mxu0 0.0
      %466 = vmatprep.subr.mxu0 0.0
      %467 = vmatpush1.msra.mxu0 0.0
      %468 = vmatprep.subr.mxu0 0.0
      %469 = vmatpush1.msra.mxu0 0.0
      %470 = vmatprep.subr.mxu0 0.0
      %471 = vmatpush1.msra.mxu0 0.0
      %472 = vmatprep.subr.mxu0 0.0
      %473 = vmatpush1.msra.mxu0 0.0
      %474 = vmatprep.subr.mxu0 0.0
      %475 = vmatpush1.msra.mxu0 0.0
      %476 = vmatprep.subr.mxu0 0.0
      %477 = vmatpush1.msra.mxu0 0.0
      %478 = vmatprep.mubr.f32.mxu0 0.0
      %479 = vmatmul.mubr.f32.gmra.mrb[0].mxu0 %v409
      %v480 = vpop.f32.mrb[0].mxu0
      %v481 = vadd.f32 0.0, %v480
      %v482 = vpop.f32.mrb[0].mxu0
      %483 = vmatprep.mubr.f32.mxu0 0.0
      %484 = vmatmul.mubr.f32.gmra.mrb[0].mxu0 %v412
      %v485 = vpop.f32.mrb[0].mxu0
      %v486 = vadd.f32 0.0, %v485
      %v487 = vpop.f32.mrb[0].mxu0
      %488 = vdwg.mxu0
      %v489 = vld [vmem:[%s3] sm:$0xff]
      %v490 = vld [vmem:[%s3 + $0x8] sm:$0xff]
      %v491 = vld [vmem:[%s3 + $0x10] sm:$0xff]
      %v492 = vld [vmem:[%s3 + $0x18] sm:$0xff]
      %vm493 = vcmask 261120
      %v495 = vsel %vm493, %v481, 0
      %v498 = vsel %vm493, %v486, 0
      %500 = vmatprep.subr.mxu0 0.0
      %501 = vmatpush1.msra.mxu0 %v489
      %502 = vmatprep.subr.mxu0 0.0
      %503 = vmatpush1.msra.mxu0 %v490
      %504 = vmatprep.subr.mxu0 0.0
      %505 = vmatpush1.msra.mxu0 %v491
      %506 = vmatprep.subr.mxu0 0.0
      %507 = vmatpush1.msra.mxu0 %v492
      %508 = vmatprep.subr.mxu0 0.0
      %509 = vmatpush1.msra.mxu0 0.0
      %510 = vmatprep.subr.mxu0 0.0
      %511 = vmatpush1.msra.mxu0 0.0
      %512 = vmatprep.subr.mxu0 0.0
      %513 = vmatpush1.msra.mxu0 0.0
      %514 = vmatprep.subr.mxu0 0.0
      %515 = vmatpush1.msra.mxu0 0.0
      %516 = vmatprep.subr.mxu0 0.0
      %517 = vmatpush1.msra.mxu0 0.0
      %518 = vmatprep.subr.mxu0 0.0
      %519 = vmatpush1.msra.mxu0 0.0
      %520 = vmatprep.subr.mxu0 0.0
      %521 = vmatpush1.msra.mxu0 0.0
      %522 = vmatprep.subr.mxu0 0.0
      %523 = vmatpush1.msra.mxu0 0.0
      %524 = vmatprep.subr.mxu0 0.0
      %525 = vmatpush1.msra.mxu0 0.0
      %526 = vmatprep.subr.mxu0 0.0
      %527 = vmatpush1.msra.mxu0 0.0
      %528 = vmatprep.subr.mxu0 0.0
      %529 = vmatpush1.msra.mxu0 0.0
      %530 = vmatprep.subr.mxu0 0.0
      %531 = vmatpush1.msra.mxu0 0.0
      %532 = vmatprep.subr.mxu0 0.0
      %533 = vmatpush1.msra.mxu0 0.0
      %534 = vmatprep.subr.mxu0 0.0
      %535 = vmatpush1.msra.mxu0 0.0
      %536 = vmatprep.subr.mxu0 0.0
      %537 = vmatpush1.msra.mxu0 0.0
      %538 = vmatprep.subr.mxu0 0.0
      %539 = vmatpush1.msra.mxu0 0.0
      %540 = vmatprep.subr.mxu0 0.0
      %541 = vmatpush1.msra.mxu0 0.0
      %542 = vmatprep.subr.mxu0 0.0
      %543 = vmatpush1.msra.mxu0 0.0
      %544 = vmatprep.subr.mxu0 0.0
      %545 = vmatpush1.msra.mxu0 0.0
      %546 = vmatprep.subr.mxu0 0.0
      %547 = vmatpush1.msra.mxu0 0.0
      %548 = vmatprep.subr.mxu0 0.0
      %549 = vmatpush1.msra.mxu0 0.0
      %550 = vmatprep.subr.mxu0 0.0
      %551 = vmatpush1.msra.mxu0 0.0
      %552 = vmatprep.subr.mxu0 0.0
      %553 = vmatpush1.msra.mxu0 0.0
      %554 = vmatprep.subr.mxu0 0.0
      %555 = vmatpush1.msra.mxu0 0.0
      %556 = vmatprep.subr.mxu0 0.0
      %557 = vmatpush1.msra.mxu0 0.0
      %558 = vmatprep.subr.mxu0 0.0
      %559 = vmatpush1.msra.mxu0 0.0
      %560 = vmatprep.subr.mxu0 0.0
      %561 = vmatpush1.msra.mxu0 0.0
      %562 = vmatprep.subr.mxu0 0.0
      %563 = vmatpush1.msra.mxu0 0.0
      %564 = vmatprep.mubr.f32.mxu0 0.0
      %565 = vmatmul.mubr.f32.gmra.mrb[0].mxu0 %v495
      %v566 = vpop.f32.mrb[0].mxu0
      %v567 = vadd.f32 0.0, %v566
      %v568 = vpop.f32.mrb[0].mxu0
      %569 = vmatprep.mubr.f32.mxu0 0.0
      %570 = vmatmul.mubr.f32.gmra.mrb[0].mxu0 %v498
      %v571 = vpop.f32.mrb[0].mxu0
      %v572 = vadd.f32 0.0, %v571
      %v573 = vpop.f32.mrb[0].mxu0
      %574 = vdwg.mxu0
      %vm575 = vcmask 523264
      %576 = vst.msk [vmem:[#allocation3] sm:$0xff] %vm575, 0.0
      %577 = vst.msk [vmem:[#allocation3 + $0x8] sm:$0xff] %vm575, 0.0
      %vm578 = vcmask 517120
      %579 = vst.msk [vmem:[#allocation3 + $0x10] sm:$0x3] %vm578, 0.0
      %580 = vst.msk [vmem:[#allocation2] sm:$0xff] %vm575, 0.0
      %581 = vst.msk [vmem:[#allocation2 + $0x8] sm:$0xff] %vm575, 0.0
      %582 = vst.msk [vmem:[#allocation2 + $0x10] sm:$0x3] %vm578, 0.0
      %v583 = vld [vmem:[%s398] sm:$0xff]
      %v584 = vld [vmem:[%s398 + $0x8] sm:$0xff]
      %585 = vst.msk [vmem:[#allocation3 + $0x1] sm:$0xff] %vm575, %v583
      %586 = vst.msk [vmem:[#allocation3 + $0x9] sm:$0xff] %vm575, %v584
      %587 = vst.msk [vmem:[#allocation2 + $0x1] sm:$0xff] %vm575, %v567
      %588 = vst.msk [vmem:[#allocation2 + $0x9] sm:$0xff] %vm575, %v572
      %v589 = vld [vmem:[#allocation3] sm:$0xff]
      %v590 = vld [vmem:[#allocation3 + $0x8] sm:$0xff]
      %v591 = vld [vmem:[%s4] sm:$0xff]
      %v592 = vld [vmem:[%s4 + $0x8] sm:$0xff]
      %v593 = vld [vmem:[%s4 + $0x10] sm:$0xff]
      %v594 = vld [vmem:[%s4 + $0x18] sm:$0xff]
      %v595 = vld [vmem:[%s4 + $0x20] sm:$0xff]
      %v596 = vld [vmem:[%s4 + $0x28] sm:$0xff]
      %v597 = vld [vmem:[%s4 + $0x30] sm:$0xff]
      %v598 = vld [vmem:[%s4 + $0x38] sm:$0xff]
      %v599 = vld [vmem:[#allocation3 + $0x1] sm:$0xff]
      %v600 = vld [vmem:[#allocation3 + $0x9] sm:$0xff]
      %s601 = scalar_lea.vmem %s4, 64
      %v602 = vld [vmem:[%s601] sm:$0xff]
      %v603 = vld [vmem:[%s601 + $0x8] sm:$0xff]
      %v604 = vld [vmem:[%s601 + $0x10] sm:$0xff]
      %v605 = vld [vmem:[%s601 + $0x18] sm:$0xff]
      %v606 = vld [vmem:[%s601 + $0x20] sm:$0xff]
      %v607 = vld [vmem:[%s601 + $0x28] sm:$0xff]
      %v608 = vld [vmem:[%s601 + $0x30] sm:$0xff]
      %v609 = vld [vmem:[%s601 + $0x38] sm:$0xff]
      %v611 = vsel %vm575, %v599, 0
      %v614 = vsel %vm575, %v600, 0
      %616 = vmatprep.subr.mxu0 0.0
      %617 = vmatpush1.msra.mxu0 %v602
      %618 = vmatprep.subr.mxu0 0.0
      %619 = vmatpush1.msra.mxu0 %v603
      %620 = vmatprep.subr.mxu0 0.0
      %621 = vmatpush1.msra.mxu0 %v604
      %622 = vmatprep.subr.mxu0 0.0
      %623 = vmatpush1.msra.mxu0 %v605
      %624 = vmatprep.subr.mxu0 0.0
      %625 = vmatpush1.msra.mxu0 %v606
      %626 = vmatprep.subr.mxu0 0.0
      %627 = vmatpush1.msra.mxu0 %v607
      %628 = vmatprep.subr.mxu0 0.0
      %629 = vmatpush1.msra.mxu0 %v608
      %630 = vmatprep.subr.mxu0 0.0
      %631 = vmatpush1.msra.mxu0 %v609
      %632 = vmatprep.subr.mxu0 0.0
      %633 = vmatpush1.msra.mxu0 0.0
      %634 = vmatprep.subr.mxu0 0.0
      %635 = vmatpush1.msra.mxu0 0.0
      %636 = vmatprep.subr.mxu0 0.0
      %637 = vmatpush1.msra.mxu0 0.0
      %638 = vmatprep.subr.mxu0 0.0
      %639 = vmatpush1.msra.mxu0 0.0
      %640 = vmatprep.subr.mxu0 0.0
      %641 = vmatpush1.msra.mxu0 0.0
      %642 = vmatprep.subr.mxu0 0.0
      %643 = vmatpush1.msra.mxu0 0.0
      %644 = vmatprep.subr.mxu0 0.0
      %645 = vmatpush1.msra.mxu0 0.0
      %646 = vmatprep.subr.mxu0 0.0
      %647 = vmatpush1.msra.mxu0 0.0
      %648 = vmatprep.subr.mxu0 0.0
      %649 = vmatpush1.msra.mxu0 0.0
      %650 = vmatprep.subr.mxu0 0.0
      %651 = vmatpush1.msra.mxu0 0.0
      %652 = vmatprep.subr.mxu0 0.0
      %653 = vmatpush1.msra.mxu0 0.0
      %654 = vmatprep.subr.mxu0 0.0
      %655 = vmatpush1.msra.mxu0 0.0
      %656 = vmatprep.subr.mxu0 0.0
      %657 = vmatpush1.msra.mxu0 0.0
      %658 = vmatprep.subr.mxu0 0.0
      %659 = vmatpush1.msra.mxu0 0.0
      %660 = vmatprep.subr.mxu0 0.0
      %661 = vmatpush1.msra.mxu0 0.0
      %662 = vmatprep.subr.mxu0 0.0
      %663 = vmatpush1.msra.mxu0 0.0
      %664 = vmatprep.subr.mxu0 0.0
      %665 = vmatpush1.msra.mxu0 0.0
      %666 = vmatprep.subr.mxu0 0.0
      %667 = vmatpush1.msra.mxu0 0.0
      %668 = vmatprep.subr.mxu0 0.0
      %669 = vmatpush1.msra.mxu0 0.0
      %670 = vmatprep.subr.mxu0 0.0
      %671 = vmatpush1.msra.mxu0 0.0
      %672 = vmatprep.subr.mxu0 0.0
      %673 = vmatpush1.msra.mxu0 0.0
      %674 = vmatprep.subr.mxu0 0.0
      %675 = vmatpush1.msra.mxu0 0.0
      %676 = vmatprep.subr.mxu0 0.0
      %677 = vmatpush1.msra.mxu0 0.0
      %678 = vmatprep.subr.mxu0 0.0
      %679 = vmatpush1.msra.mxu0 0.0
      %680 = vmatprep.mubr.f32.mxu0 0.0
      %681 = vmatmul.mubr.f32.gmra.mrb[0].mxu0 %v611
      %v682 = vpop.f32.mrb[0].mxu0
      %v683 = vadd.f32 0.0, %v682
      %v684 = vpop.f32.mrb[0].mxu0
      %685 = vmatprep.mubr.f32.mxu0 0.0
      %686 = vmatmul.mubr.f32.gmra.mrb[0].mxu0 %v614
      %v687 = vpop.f32.mrb[0].mxu0
      %v688 = vadd.f32 0.0, %v687
      %v689 = vpop.f32.mrb[0].mxu0
      %690 = vdwg.mxu0
      %v692 = vsel %vm575, %v589, 0
      %v695 = vsel %vm575, %v590, 0
      %697 = vmatprep.subr.mxu0 0.0
      %698 = vmatpush1.msra.mxu0 %v591
      %699 = vmatprep.subr.mxu0 0.0
      %700 = vmatpush1.msra.mxu0 %v592
      %701 = vmatprep.subr.mxu0 0.0
      %702 = vmatpush1.msra.mxu0 %v593
      %703 = vmatprep.subr.mxu0 0.0
      %704 = vmatpush1.msra.mxu0 %v594
      %705 = vmatprep.subr.mxu0 0.0
      %706 = vmatpush1.msra.mxu0 %v595
      %707 = vmatprep.subr.mxu0 0.0
      %708 = vmatpush1.msra.mxu0 %v596
      %709 = vmatprep.subr.mxu0 0.0
      %710 = vmatpush1.msra.mxu0 %v597
      %711 = vmatprep.subr.mxu0 0.0
      %712 = vmatpush1.msra.mxu0 %v598
      %713 = vmatprep.subr.mxu0 0.0
      %714 = vmatpush1.msra.mxu0 0.0
      %715 = vmatprep.subr.mxu0 0.0
      %716 = vmatpush1.msra.mxu0 0.0
      %717 = vmatprep.subr.mxu0 0.0
      %718 = vmatpush1.msra.mxu0 0.0
      %719 = vmatprep.subr.mxu0 0.0
      %720 = vmatpush1.msra.mxu0 0.0
      %721 = vmatprep.subr.mxu0 0.0
      %722 = vmatpush1.msra.mxu0 0.0
      %723 = vmatprep.subr.mxu0 0.0
      %724 = vmatpush1.msra.mxu0 0.0
      %725 = vmatprep.subr.mxu0 0.0
      %726 = vmatpush1.msra.mxu0 0.0
      %727 = vmatprep.subr.mxu0 0.0
      %728 = vmatpush1.msra.mxu0 0.0
      %729 = vmatprep.subr.mxu0 0.0
      %730 = vmatpush1.msra.mxu0 0.0
      %731 = vmatprep.subr.mxu0 0.0
      %732 = vmatpush1.msra.mxu0 0.0
      %733 = vmatprep.subr.mxu0 0.0
      %734 = vmatpush1.msra.mxu0 0.0
      %735 = vmatprep.subr.mxu0 0.0
      %736 = vmatpush1.msra.mxu0 0.0
      %737 = vmatprep.subr.mxu0 0.0
      %738 = vmatpush1.msra.mxu0 0.0
      %739 = vmatprep.subr.mxu0 0.0
      %740 = vmatpush1.msra.mxu0 0.0
      %741 = vmatprep.subr.mxu0 0.0
      %742 = vmatpush1.msra.mxu0 0.0
      %743 = vmatprep.subr.mxu0 0.0
      %744 = vmatpush1.msra.mxu0 0.0
      %745 = vmatprep.subr.mxu0 0.0
      %746 = vmatpush1.msra.mxu0 0.0
      %747 = vmatprep.subr.mxu0 0.0
      %748 = vmatpush1.msra.mxu0 0.0
      %749 = vmatprep.subr.mxu0 0.0
      %750 = vmatpush1.msra.mxu0 0.0
      %751 = vmatprep.subr.mxu0 0.0
      %752 = vmatpush1.msra.mxu0 0.0
      %753 = vmatprep.subr.mxu0 0.0
      %754 = vmatpush1.msra.mxu0 0.0
      %755 = vmatprep.subr.mxu0 0.0
      %756 = vmatpush1.msra.mxu0 0.0
      %757 = vmatprep.subr.mxu0 0.0
      %758 = vmatpush1.msra.mxu0 0.0
      %759 = vmatprep.subr.mxu0 0.0
      %760 = vmatpush1.msra.mxu0 0.0
      %761 = vmatprep.mubr.f32.mxu0 0.0
      %762 = vmatmul.mubr.f32.gmra.mrb[0].mxu0 %v692
      %v763 = vpop.f32.mrb[0].mxu0
      %v764 = vadd.f32 %v683, %v763
      %v765 = vpop.f32.mrb[0].mxu0
      %766 = vmatprep.mubr.f32.mxu0 0.0
      %767 = vmatmul.mubr.f32.gmra.mrb[0].mxu0 %v695
      %v768 = vpop.f32.mrb[0].mxu0
      %v769 = vadd.f32 %v688, %v768
      %v770 = vpop.f32.mrb[0].mxu0
      %771 = vdwg.mxu0
      %v772 = vld [vmem:[#allocation3 + $0x2] sm:$0xff]
      %v773 = vld [vmem:[#allocation3 + $0xa] sm:$0xff]
      %s774 = scalar_lea.vmem %s4, 128
      %v775 = vld [vmem:[%s774] sm:$0xff]
      %v776 = vld [vmem:[%s774 + $0x8] sm:$0xff]
      %v777 = vld [vmem:[%s774 + $0x10] sm:$0xff]
      %v778 = vld [vmem:[%s774 + $0x18] sm:$0xff]
      %v779 = vld [vmem:[%s774 + $0x20] sm:$0xff]
      %v780 = vld [vmem:[%s774 + $0x28] sm:$0xff]
      %v781 = vld [vmem:[%s774 + $0x30] sm:$0xff]
      %v782 = vld [vmem:[%s774 + $0x38] sm:$0xff]
      %v784 = vsel %vm575, %v772, 0
      %v787 = vsel %vm575, %v773, 0
      %789 = vmatprep.subr.mxu0 0.0
      %790 = vmatpush1.msra.mxu0 %v775
      %791 = vmatprep.subr.mxu0 0.0
      %792 = vmatpush1.msra.mxu0 %v776
      %793 = vmatprep.subr.mxu0 0.0
      %794 = vmatpush1.msra.mxu0 %v777
      %795 = vmatprep.subr.mxu0 0.0
      %796 = vmatpush1.msra.mxu0 %v778
      %797 = vmatprep.subr.mxu0 0.0
      %798 = vmatpush1.msra.mxu0 %v779
      %799 = vmatprep.subr.mxu0 0.0
      %800 = vmatpush1.msra.mxu0 %v780
      %801 = vmatprep.subr.mxu0 0.0
      %802 = vmatpush1.msra.mxu0 %v781
      %803 = vmatprep.subr.mxu0 0.0
      %804 = vmatpush1.msra.mxu0 %v782
      %805 = vmatprep.subr.mxu0 0.0
      %806 = vmatpush1.msra.mxu0 0.0
      %807 = vmatprep.subr.mxu0 0.0
      %808 = vmatpush1.msra.mxu0 0.0
      %809 = vmatprep.subr.mxu0 0.0
      %810 = vmatpush1.msra.mxu0 0.0
      %811 = vmatprep.subr.mxu0 0.0
      %812 = vmatpush1.msra.mxu0 0.0
      %813 = vmatprep.subr.mxu0 0.0
      %814 = vmatpush1.msra.mxu0 0.0
      %815 = vmatprep.subr.mxu0 0.0
      %816 = vmatpush1.msra.mxu0 0.0
      %817 = vmatprep.subr.mxu0 0.0
      %818 = vmatpush1.msra.mxu0 0.0
      %819 = vmatprep.subr.mxu0 0.0
      %820 = vmatpush1.msra.mxu0 0.0
      %821 = vmatprep.subr.mxu0 0.0
      %822 = vmatpush1.msra.mxu0 0.0
      %823 = vmatprep.subr.mxu0 0.0
      %824 = vmatpush1.msra.mxu0 0.0
      %825 = vmatprep.subr.mxu0 0.0
      %826 = vmatpush1.msra.mxu0 0.0
      %827 = vmatprep.subr.mxu0 0.0
      %828 = vmatpush1.msra.mxu0 0.0
      %829 = vmatprep.subr.mxu0 0.0
      %830 = vmatpush1.msra.mxu0 0.0
      %831 = vmatprep.subr.mxu0 0.0
      %832 = vmatpush1.msra.mxu0 0.0
      %833 = vmatprep.subr.mxu0 0.0
      %834 = vmatpush1.msra.mxu0 0.0
      %835 = vmatprep.subr.mxu0 0.0
      %836 = vmatpush1.msra.mxu0 0.0
      %837 = vmatprep.subr.mxu0 0.0
      %838 = vmatpush1.msra.mxu0 0.0
      %839 = vmatprep.subr.mxu0 0.0
      %840 = vmatpush1.msra.mxu0 0.0
      %841 = vmatprep.subr.mxu0 0.0
      %842 = vmatpush1.msra.mxu0 0.0
      %843 = vmatprep.subr.mxu0 0.0
      %844 = vmatpush1.msra.mxu0 0.0
      %845 = vmatprep.subr.mxu0 0.0
      %846 = vmatpush1.msra.mxu0 0.0
      %847 = vmatprep.subr.mxu0 0.0
      %848 = vmatpush1.msra.mxu0 0.0
      %849 = vmatprep.subr.mxu0 0.0
      %850 = vmatpush1.msra.mxu0 0.0
      %851 = vmatprep.subr.mxu0 0.0
      %852 = vmatpush1.msra.mxu0 0.0
      %853 = vmatprep.mubr.f32.mxu0 0.0
      %854 = vmatmul.mubr.f32.gmra.mrb[0].mxu0 %v784
      %v855 = vpop.f32.mrb[0].mxu0
      %v856 = vadd.f32 0.0, %v855
      %v857 = vpop.f32.mrb[0].mxu0
      %858 = vmatprep.mubr.f32.mxu0 0.0
      %859 = vmatmul.mubr.f32.gmra.mrb[0].mxu0 %v787
      %v860 = vpop.f32.mrb[0].mxu0
      %v861 = vadd.f32 0.0, %v860
      %v862 = vpop.f32.mrb[0].mxu0
      %863 = vdwg.mxu0
      %v864 = vadd.f32 %v764, %v856
      %v865 = vadd.f32 %v769, %v861
      %v866 = vld [vmem:[#allocation2] sm:$0xff]
      %v867 = vld [vmem:[#allocation2 + $0x8] sm:$0xff]
      %v868 = vld [vmem:[%s5] sm:$0xff]
      %v869 = vld [vmem:[%s5 + $0x8] sm:$0xff]
      %v870 = vld [vmem:[%s5 + $0x10] sm:$0xff]
      %v871 = vld [vmem:[%s5 + $0x18] sm:$0xff]
      %v872 = vld [vmem:[%s5 + $0x20] sm:$0xff]
      %v873 = vld [vmem:[%s5 + $0x28] sm:$0xff]
      %v874 = vld [vmem:[%s5 + $0x30] sm:$0xff]
      %v875 = vld [vmem:[%s5 + $0x38] sm:$0xff]
      %v877 = vsel %vm575, %v866, 0
      %v880 = vsel %vm575, %v867, 0
      %882 = vmatprep.subr.mxu0 0.0
      %883 = vmatpush1.msra.mxu0 %v868
      %884 = vmatprep.subr.mxu0 0.0
      %885 = vmatpush1.msra.mxu0 %v869
      %886 = vmatprep.subr.mxu0 0.0
      %887 = vmatpush1.msra.mxu0 %v870
      %888 = vmatprep.subr.mxu0 0.0
      %889 = vmatpush1.msra.mxu0 %v871
      %890 = vmatprep.subr.mxu0 0.0
      %891 = vmatpush1.msra.mxu0 %v872
      %892 = vmatprep.subr.mxu0 0.0
      %893 = vmatpush1.msra.mxu0 %v873
      %894 = vmatprep.subr.mxu0 0.0
      %895 = vmatpush1.msra.mxu0 %v874
      %896 = vmatprep.subr.mxu0 0.0
      %897 = vmatpush1.msra.mxu0 %v875
      %898 = vmatprep.subr.mxu0 0.0
      %899 = vmatpush1.msra.mxu0 0.0
      %900 = vmatprep.subr.mxu0 0.0
      %901 = vmatpush1.msra.mxu0 0.0
      %902 = vmatprep.subr.mxu0 0.0
      %903 = vmatpush1.msra.mxu0 0.0
      %904 = vmatprep.subr.mxu0 0.0
      %905 = vmatpush1.msra.mxu0 0.0
      %906 = vmatprep.subr.mxu0 0.0
      %907 = vmatpush1.msra.mxu0 0.0
      %908 = vmatprep.subr.mxu0 0.0
      %909 = vmatpush1.msra.mxu0 0.0
      %910 = vmatprep.subr.mxu0 0.0
      %911 = vmatpush1.msra.mxu0 0.0
      %912 = vmatprep.subr.mxu0 0.0
      %913 = vmatpush1.msra.mxu0 0.0
      %914 = vmatprep.subr.mxu0 0.0
      %915 = vmatpush1.msra.mxu0 0.0
      %916 = vmatprep.subr.mxu0 0.0
      %917 = vmatpush1.msra.mxu0 0.0
      %918 = vmatprep.subr.mxu0 0.0
      %919 = vmatpush1.msra.mxu0 0.0
      %920 = vmatprep.subr.mxu0 0.0
      %921 = vmatpush1.msra.mxu0 0.0
      %922 = vmatprep.subr.mxu0 0.0
      %923 = vmatpush1.msra.mxu0 0.0
      %924 = vmatprep.subr.mxu0 0.0
      %925 = vmatpush1.msra.mxu0 0.0
      %926 = vmatprep.subr.mxu0 0.0
      %927 = vmatpush1.msra.mxu0 0.0
      %928 = vmatprep.subr.mxu0 0.0
      %929 = vmatpush1.msra.mxu0 0.0
      %930 = vmatprep.subr.mxu0 0.0
      %931 = vmatpush1.msra.mxu0 0.0
      %932 = vmatprep.subr.mxu0 0.0
      %933 = vmatpush1.msra.mxu0 0.0
      %934 = vmatprep.subr.mxu0 0.0
      %935 = vmatpush1.msra.mxu0 0.0
      %936 = vmatprep.subr.mxu0 0.0
      %937 = vmatpush1.msra.mxu0 0.0
      %938 = vmatprep.subr.mxu0 0.0
      %939 = vmatpush1.msra.mxu0 0.0
      %940 = vmatprep.subr.mxu0 0.0
      %941 = vmatpush1.msra.mxu0 0.0
      %942 = vmatprep.subr.mxu0 0.0
      %943 = vmatpush1.msra.mxu0 0.0
      %944 = vmatprep.subr.mxu0 0.0
      %945 = vmatpush1.msra.mxu0 0.0
      %946 = vmatprep.mubr.f32.mxu0 0.0
      %947 = vmatmul.mubr.f32.gmra.mrb[0].mxu0 %v877
      %v948 = vpop.f32.mrb[0].mxu0
      %v949 = vadd.f32 0.0, %v948
      %v950 = vpop.f32.mrb[0].mxu0
      %951 = vmatprep.mubr.f32.mxu0 0.0
      %952 = vmatmul.mubr.f32.gmra.mrb[0].mxu0 %v880
      %v953 = vpop.f32.mrb[0].mxu0
      %v954 = vadd.f32 0.0, %v953
      %v955 = vpop.f32.mrb[0].mxu0
      %956 = vdwg.mxu0
      %v957 = vadd.f32 %v864, %v949
      %v958 = vadd.f32 %v865, %v954
      %v959 = vld [vmem:[#allocation2 + $0x1] sm:$0xff]
      %v960 = vld [vmem:[#allocation2 + $0x9] sm:$0xff]
      %s961 = scalar_lea.vmem %s5, 64
      %v962 = vld [vmem:[%s961] sm:$0xff]
      %v963 = vld [vmem:[%s961 + $0x8] sm:$0xff]
      %v964 = vld [vmem:[%s961 + $0x10] sm:$0xff]
      %v965 = vld [vmem:[%s961 + $0x18] sm:$0xff]
      %v966 = vld [vmem:[%s961 + $0x20] sm:$0xff]
      %v967 = vld [vmem:[%s961 + $0x28] sm:$0xff]
      %v968 = vld [vmem:[%s961 + $0x30] sm:$0xff]
      %v969 = vld [vmem:[%s961 + $0x38] sm:$0xff]
      %v971 = vsel %vm575, %v959, 0
      %v974 = vsel %vm575, %v960, 0
      %976 = vmatprep.subr.mxu0 0.0
      %977 = vmatpush1.msra.mxu0 %v962
      %978 = vmatprep.subr.mxu0 0.0
      %979 = vmatpush1.msra.mxu0 %v963
      %980 = vmatprep.subr.mxu0 0.0
      %981 = vmatpush1.msra.mxu0 %v964
      %982 = vmatprep.subr.mxu0 0.0
      %983 = vmatpush1.msra.mxu0 %v965
      %984 = vmatprep.subr.mxu0 0.0
      %985 = vmatpush1.msra.mxu0 %v966
      %986 = vmatprep.subr.mxu0 0.0
      %987 = vmatpush1.msra.mxu0 %v967
      %988 = vmatprep.subr.mxu0 0.0
      %989 = vmatpush1.msra.mxu0 %v968
      %990 = vmatprep.subr.mxu0 0.0
      %991 = vmatpush1.msra.mxu0 %v969
      %992 = vmatprep.subr.mxu0 0.0
      %993 = vmatpush1.msra.mxu0 0.0
      %994 = vmatprep.subr.mxu0 0.0
      %995 = vmatpush1.msra.mxu0 0.0
      %996 = vmatprep.subr.mxu0 0.0
      %997 = vmatpush1.msra.mxu0 0.0
      %998 = vmatprep.subr.mxu0 0.0
      %999 = vmatpush1.msra.mxu0 0.0
      %1000 = vmatprep.subr.mxu0 0.0
      %1001 = vmatpush1.msra.mxu0 0.0
      %1002 = vmatprep.subr.mxu0 0.0
      %1003 = vmatpush1.msra.mxu0 0.0
      %1004 = vmatprep.subr.mxu0 0.0
      %1005 = vmatpush1.msra.mxu0 0.0
      %1006 = vmatprep.subr.mxu0 0.0
      %1007 = vmatpush1.msra.mxu0 0.0
      %1008 = vmatprep.subr.mxu0 0.0
      %1009 = vmatpush1.msra.mxu0 0.0
      %1010 = vmatprep.subr.mxu0 0.0
      %1011 = vmatpush1.msra.mxu0 0.0
      %1012 = vmatprep.subr.mxu0 0.0
      %1013 = vmatpush1.msra.mxu0 0.0
      %1014 = vmatprep.subr.mxu0 0.0
      %1015 = vmatpush1.msra.mxu0 0.0
      %1016 = vmatprep.subr.mxu0 0.0
      %1017 = vmatpush1.msra.mxu0 0.0
      %1018 = vmatprep.subr.mxu0 0.0
      %1019 = vmatpush1.msra.mxu0 0.0
      %1020 = vmatprep.subr.mxu0 0.0
      %1021 = vmatpush1.msra.mxu0 0.0
      %1022 = vmatprep.subr.mxu0 0.0
      %1023 = vmatpush1.msra.mxu0 0.0
      %1024 = vmatprep.subr.mxu0 0.0
      %1025 = vmatpush1.msra.mxu0 0.0
      %1026 = vmatprep.subr.mxu0 0.0
      %1027 = vmatpush1.msra.mxu0 0.0
      %1028 = vmatprep.subr.mxu0 0.0
      %1029 = vmatpush1.msra.mxu0 0.0
      %1030 = vmatprep.subr.mxu0 0.0
      %1031 = vmatpush1.msra.mxu0 0.0
      %1032 = vmatprep.subr.mxu0 0.0
      %1033 = vmatpush1.msra.mxu0 0.0
      %1034 = vmatprep.subr.mxu0 0.0
      %1035 = vmatpush1.msra.mxu0 0.0
      %1036 = vmatprep.subr.mxu0 0.0
      %1037 = vmatpush1.msra.mxu0 0.0
      %1038 = vmatprep.subr.mxu0 0.0
      %1039 = vmatpush1.msra.mxu0 0.0
      %1040 = vmatprep.mubr.f32.mxu0 0.0
      %1041 = vmatmul.mubr.f32.gmra.mrb[0].mxu0 %v971
      %v1042 = vpop.f32.mrb[0].mxu0
      %v1043 = vadd.f32 0.0, %v1042
      %v1044 = vpop.f32.mrb[0].mxu0
      %1045 = vmatprep.mubr.f32.mxu0 0.0
      %1046 = vmatmul.mubr.f32.gmra.mrb[0].mxu0 %v974
      %v1047 = vpop.f32.mrb[0].mxu0
      %v1048 = vadd.f32 0.0, %v1047
      %v1049 = vpop.f32.mrb[0].mxu0
      %1050 = vdwg.mxu0
      %v1051 = vadd.f32 %v957, %v1043
      %v1052 = vadd.f32 %v958, %v1048
      %v1053 = vld [vmem:[#allocation2 + $0x2] sm:$0xff]
      %v1054 = vld [vmem:[#allocation2 + $0xa] sm:$0xff]
      %s1055 = scalar_lea.vmem %s5, 128
      %v1056 = vld [vmem:[%s1055] sm:$0xff]
      %v1057 = vld [vmem:[%s1055 + $0x8] sm:$0xff]
      %v1058 = vld [vmem:[%s1055 + $0x10] sm:$0xff]
      %v1059 = vld [vmem:[%s1055 + $0x18] sm:$0xff]
      %v1060 = vld [vmem:[%s1055 + $0x20] sm:$0xff]
      %v1061 = vld [vmem:[%s1055 + $0x28] sm:$0xff]
      %v1062 = vld [vmem:[%s1055 + $0x30] sm:$0xff]
      %v1063 = vld [vmem:[%s1055 + $0x38] sm:$0xff]
      %v1065 = vsel %vm575, %v1053, 0
      %v1068 = vsel %vm575, %v1054, 0
      %1070 = vmatprep.subr.mxu0 0.0
      %1071 = vmatpush1.msra.mxu0 %v1056
      %1072 = vmatprep.subr.mxu0 0.0
      %1073 = vmatpush1.msra.mxu0 %v1057
      %1074 = vmatprep.subr.mxu0 0.0
      %1075 = vmatpush1.msra.mxu0 %v1058
      %1076 = vmatprep.subr.mxu0 0.0
      %1077 = vmatpush1.msra.mxu0 %v1059
      %1078 = vmatprep.subr.mxu0 0.0
      %1079 = vmatpush1.msra.mxu0 %v1060
      %1080 = vmatprep.subr.mxu0 0.0
      %1081 = vmatpush1.msra.mxu0 %v1061
      %1082 = vmatprep.subr.mxu0 0.0
      %1083 = vmatpush1.msra.mxu0 %v1062
      %1084 = vmatprep.subr.mxu0 0.0
      %1085 = vmatpush1.msra.mxu0 %v1063
      %1086 = vmatprep.subr.mxu0 0.0
      %1087 = vmatpush1.msra.mxu0 0.0
      %1088 = vmatprep.subr.mxu0 0.0
      %1089 = vmatpush1.msra.mxu0 0.0
      %1090 = vmatprep.subr.mxu0 0.0
      %1091 = vmatpush1.msra.mxu0 0.0
      %1092 = vmatprep.subr.mxu0 0.0
      %1093 = vmatpush1.msra.mxu0 0.0
      %1094 = vmatprep.subr.mxu0 0.0
      %1095 = vmatpush1.msra.mxu0 0.0
      %1096 = vmatprep.subr.mxu0 0.0
      %1097 = vmatpush1.msra.mxu0 0.0
      %1098 = vmatprep.subr.mxu0 0.0
      %1099 = vmatpush1.msra.mxu0 0.0
      %1100 = vmatprep.subr.mxu0 0.0
      %1101 = vmatpush1.msra.mxu0 0.0
      %1102 = vmatprep.subr.mxu0 0.0
      %1103 = vmatpush1.msra.mxu0 0.0
      %1104 = vmatprep.subr.mxu0 0.0
      %1105 = vmatpush1.msra.mxu0 0.0
      %1106 = vmatprep.subr.mxu0 0.0
      %1107 = vmatpush1.msra.mxu0 0.0
      %1108 = vmatprep.subr.mxu0 0.0
      %1109 = vmatpush1.msra.mxu0 0.0
      %1110 = vmatprep.subr.mxu0 0.0
      %1111 = vmatpush1.msra.mxu0 0.0
      %1112 = vmatprep.subr.mxu0 0.0
      %1113 = vmatpush1.msra.mxu0 0.0
      %1114 = vmatprep.subr.mxu0 0.0
      %1115 = vmatpush1.msra.mxu0 0.0
      %1116 = vmatprep.subr.mxu0 0.0
      %1117 = vmatpush1.msra.mxu0 0.0
      %1118 = vmatprep.subr.mxu0 0.0
      %1119 = vmatpush1.msra.mxu0 0.0
      %1120 = vmatprep.subr.mxu0 0.0
      %1121 = vmatpush1.msra.mxu0 0.0
      %1122 = vmatprep.subr.mxu0 0.0
      %1123 = vmatpush1.msra.mxu0 0.0
      %1124 = vmatprep.subr.mxu0 0.0
      %1125 = vmatpush1.msra.mxu0 0.0
      %1126 = vmatprep.subr.mxu0 0.0
      %1127 = vmatpush1.msra.mxu0 0.0
      %1128 = vmatprep.subr.mxu0 0.0
      %1129 = vmatpush1.msra.mxu0 0.0
      %1130 = vmatprep.subr.mxu0 0.0
      %1131 = vmatpush1.msra.mxu0 0.0
      %1132 = vmatprep.subr.mxu0 0.0
      %1133 = vmatpush1.msra.mxu0 0.0
      %1134 = vmatprep.mubr.f32.mxu0 0.0
      %1135 = vmatmul.mubr.f32.gmra.mrb[0].mxu0 %v1065
      %v1136 = vpop.f32.mrb[0].mxu0
      %v1137 = vadd.f32 0.0, %v1136
      %v1138 = vpop.f32.mrb[0].mxu0
      %1139 = vmatprep.mubr.f32.mxu0 0.0
      %1140 = vmatmul.mubr.f32.gmra.mrb[0].mxu0 %v1068
      %v1141 = vpop.f32.mrb[0].mxu0
      %v1142 = vadd.f32 0.0, %v1141
      %v1143 = vpop.f32.mrb[0].mxu0
      %1144 = vdwg.mxu0
      %v1145 = vadd.f32 %v1051, %v1137
      %v1146 = vadd.f32 %v1052, %v1142
      %v1147 = vld [vmem:[%s6] sm:$0x1]
      %v1149 = vlaneseq
      %v1150 = vshrl.u32 %v1149, 7
      %v1151 = vsub.s32 0, %v1150
      %v1152 = vrot.slane %v1147, %v1151
      %v1154 = vmul.f32 %v1145, %v1152
      %v1155 = vmul.f32 %v1146, %v1152
      %v1156 = vld [vmem:[%s7] sm:$0x1]
      %v1158 = vlaneseq
      %v1159 = vshrl.u32 %v1158, 7
      %v1160 = vsub.s32 0, %v1159
      %v1161 = vrot.slane %v1156, %v1160
      %v1163 = vadd.f32 %v1154, %v1161
      %v1164 = vadd.f32 %v1155, %v1161
      %v1165 = vmax.f32 %v1163, 0.0
      %v1166 = vmax.f32 %v1164, 0.0
      %1167 = vst.msk [vmem:[#allocation4] sm:$0xff] %vm575, 0.0
      %1168 = vst.msk [vmem:[#allocation4 + $0x8] sm:$0xff] %vm575, 0.0
      %1169 = vst.msk [vmem:[#allocation4 + $0x10] sm:$0x3] %vm578, 0.0
      %1170 = vst.msk [vmem:[#allocation4 + $0x1] sm:$0xff] %vm575, %v1165
      %1171 = vst.msk [vmem:[#allocation4 + $0x9] sm:$0xff] %vm575, %v1166
      %v1172 = vld [vmem:[#allocation4] sm:$0xff]
      %v1173 = vld [vmem:[#allocation4 + $0x8] sm:$0xff]
      %v1174 = vld [vmem:[%s8] sm:$0xff]
      %v1175 = vld [vmem:[%s8 + $0x8] sm:$0xff]
      %v1176 = vld [vmem:[%s8 + $0x10] sm:$0xff]
      %v1177 = vld [vmem:[%s8 + $0x18] sm:$0xff]
      %v1178 = vld [vmem:[%s8 + $0x20] sm:$0xff]
      %v1179 = vld [vmem:[%s8 + $0x28] sm:$0xff]
      %v1180 = vld [vmem:[%s8 + $0x30] sm:$0xff]
      %v1181 = vld [vmem:[%s8 + $0x38] sm:$0xff]
      %v1182 = vld [vmem:[#allocation4 + $0x1] sm:$0xff]
      %v1183 = vld [vmem:[#allocation4 + $0x9] sm:$0xff]
      %s1184 = scalar_lea.vmem %s8, 64
      %v1185 = vld [vmem:[%s1184] sm:$0xff]
      %v1186 = vld [vmem:[%s1184 + $0x8] sm:$0xff]
      %v1187 = vld [vmem:[%s1184 + $0x10] sm:$0xff]
      %v1188 = vld [vmem:[%s1184 + $0x18] sm:$0xff]
      %v1189 = vld [vmem:[%s1184 + $0x20] sm:$0xff]
      %v1190 = vld [vmem:[%s1184 + $0x28] sm:$0xff]
      %v1191 = vld [vmem:[%s1184 + $0x30] sm:$0xff]
      %v1192 = vld [vmem:[%s1184 + $0x38] sm:$0xff]
      %v1194 = vsel %vm575, %v1182, 0
      %v1197 = vsel %vm575, %v1183, 0
      %1199 = vmatprep.subr.mxu0 0.0
      %1200 = vmatpush1.msra.mxu0 %v1185
      %1201 = vmatprep.subr.mxu0 0.0
      %1202 = vmatpush1.msra.mxu0 %v1186
      %1203 = vmatprep.subr.mxu0 0.0
      %1204 = vmatpush1.msra.mxu0 %v1187
      %1205 = vmatprep.subr.mxu0 0.0
      %1206 = vmatpush1.msra.mxu0 %v1188
      %1207 = vmatprep.subr.mxu0 0.0
      %1208 = vmatpush1.msra.mxu0 %v1189
      %1209 = vmatprep.subr.mxu0 0.0
      %1210 = vmatpush1.msra.mxu0 %v1190
      %1211 = vmatprep.subr.mxu0 0.0
      %1212 = vmatpush1.msra.mxu0 %v1191
      %1213 = vmatprep.subr.mxu0 0.0
      %1214 = vmatpush1.msra.mxu0 %v1192
      %1215 = vmatprep.subr.mxu0 0.0
      %1216 = vmatpush1.msra.mxu0 0.0
      %1217 = vmatprep.subr.mxu0 0.0
      %1218 = vmatpush1.msra.mxu0 0.0
      %1219 = vmatprep.subr.mxu0 0.0
      %1220 = vmatpush1.msra.mxu0 0.0
      %1221 = vmatprep.subr.mxu0 0.0
      %1222 = vmatpush1.msra.mxu0 0.0
      %1223 = vmatprep.subr.mxu0 0.0
      %1224 = vmatpush1.msra.mxu0 0.0
      %1225 = vmatprep.subr.mxu0 0.0
      %1226 = vmatpush1.msra.mxu0 0.0
      %1227 = vmatprep.subr.mxu0 0.0
      %1228 = vmatpush1.msra.mxu0 0.0
      %1229 = vmatprep.subr.mxu0 0.0
      %1230 = vmatpush1.msra.mxu0 0.0
      %1231 = vmatprep.subr.mxu0 0.0
      %1232 = vmatpush1.msra.mxu0 0.0
      %1233 = vmatprep.subr.mxu0 0.0
      %1234 = vmatpush1.msra.mxu0 0.0
      %1235 = vmatprep.subr.mxu0 0.0
      %1236 = vmatpush1.msra.mxu0 0.0
      %1237 = vmatprep.subr.mxu0 0.0
      %1238 = vmatpush1.msra.mxu0 0.0
      %1239 = vmatprep.subr.mxu0 0.0
      %1240 = vmatpush1.msra.mxu0 0.0
      %1241 = vmatprep.subr.mxu0 0.0
      %1242 = vmatpush1.msra.mxu0 0.0
      %1243 = vmatprep.subr.mxu0 0.0
      %1244 = vmatpush1.msra.mxu0 0.0
      %1245 = vmatprep.subr.mxu0 0.0
      %1246 = vmatpush1.msra.mxu0 0.0
      %1247 = vmatprep.subr.mxu0 0.0
      %1248 = vmatpush1.msra.mxu0 0.0
      %1249 = vmatprep.subr.mxu0 0.0
      %1250 = vmatpush1.msra.mxu0 0.0
      %1251 = vmatprep.subr.mxu0 0.0
      %1252 = vmatpush1.msra.mxu0 0.0
      %1253 = vmatprep.subr.mxu0 0.0
      %1254 = vmatpush1.msra.mxu0 0.0
      %1255 = vmatprep.subr.mxu0 0.0
      %1256 = vmatpush1.msra.mxu0 0.0
      %1257 = vmatprep.subr.mxu0 0.0
      %1258 = vmatpush1.msra.mxu0 0.0
      %1259 = vmatprep.subr.mxu0 0.0
      %1260 = vmatpush1.msra.mxu0 0.0
      %1261 = vmatprep.subr.mxu0 0.0
      %1262 = vmatpush1.msra.mxu0 0.0
      %1263 = vmatprep.mubr.f32.mxu0 0.0
      %1264 = vmatmul.mubr.f32.gmra.mrb[0].mxu0 %v1194
      %v1265 = vpop.f32.mrb[0].mxu0
      %v1266 = vadd.f32 0.0, %v1265
      %v1267 = vpop.f32.mrb[0].mxu0
      %1268 = vmatprep.mubr.f32.mxu0 0.0
      %1269 = vmatmul.mubr.f32.gmra.mrb[0].mxu0 %v1197
      %v1270 = vpop.f32.mrb[0].mxu0
      %v1271 = vadd.f32 0.0, %v1270
      %v1272 = vpop.f32.mrb[0].mxu0
      %1273 = vdwg.mxu0
      %v1275 = vsel %vm575, %v1172, 0
      %v1278 = vsel %vm575, %v1173, 0
      %1280 = vmatprep.subr.mxu0 0.0
      %1281 = vmatpush1.msra.mxu0 %v1174
      %1282 = vmatprep.subr.mxu0 0.0
      %1283 = vmatpush1.msra.mxu0 %v1175
      %1284 = vmatprep.subr.mxu0 0.0
      %1285 = vmatpush1.msra.mxu0 %v1176
      %1286 = vmatprep.subr.mxu0 0.0
      %1287 = vmatpush1.msra.mxu0 %v1177
      %1288 = vmatprep.subr.mxu0 0.0
      %1289 = vmatpush1.msra.mxu0 %v1178
      %1290 = vmatprep.subr.mxu0 0.0
      %1291 = vmatpush1.msra.mxu0 %v1179
      %1292 = vmatprep.subr.mxu0 0.0
      %1293 = vmatpush1.msra.mxu0 %v1180
      %1294 = vmatprep.subr.mxu0 0.0
      %1295 = vmatpush1.msra.mxu0 %v1181
      %1296 = vmatprep.subr.mxu0 0.0
      %1297 = vmatpush1.msra.mxu0 0.0
      %1298 = vmatprep.subr.mxu0 0.0
      %1299 = vmatpush1.msra.mxu0 0.0
      %1300 = vmatprep.subr.mxu0 0.0
      %1301 = vmatpush1.msra.mxu0 0.0
      %1302 = vmatprep.subr.mxu0 0.0
      %1303 = vmatpush1.msra.mxu0 0.0
      %1304 = vmatprep.subr.mxu0 0.0
      %1305 = vmatpush1.msra.mxu0 0.0
      %1306 = vmatprep.subr.mxu0 0.0
      %1307 = vmatpush1.msra.mxu0 0.0
      %1308 = vmatprep.subr.mxu0 0.0
      %1309 = vmatpush1.msra.mxu0 0.0
      %1310 = vmatprep.subr.mxu0 0.0
      %1311 = vmatpush1.msra.mxu0 0.0
      %1312 = vmatprep.subr.mxu0 0.0
      %1313 = vmatpush1.msra.mxu0 0.0
      %1314 = vmatprep.subr.mxu0 0.0
      %1315 = vmatpush1.msra.mxu0 0.0
      %1316 = vmatprep.subr.mxu0 0.0
      %1317 = vmatpush1.msra.mxu0 0.0
      %1318 = vmatprep.subr.mxu0 0.0
      %1319 = vmatpush1.msra.mxu0 0.0
      %1320 = vmatprep.subr.mxu0 0.0
      %1321 = vmatpush1.msra.mxu0 0.0
      %1322 = vmatprep.subr.mxu0 0.0
      %1323 = vmatpush1.msra.mxu0 0.0
      %1324 = vmatprep.subr.mxu0 0.0
      %1325 = vmatpush1.msra.mxu0 0.0
      %1326 = vmatprep.subr.mxu0 0.0
      %1327 = vmatpush1.msra.mxu0 0.0
      %1328 = vmatprep.subr.mxu0 0.0
      %1329 = vmatpush1.msra.mxu0 0.0
      %1330 = vmatprep.subr.mxu0 0.0
      %1331 = vmatpush1.msra.mxu0 0.0
      %1332 = vmatprep.subr.mxu0 0.0
      %1333 = vmatpush1.msra.mxu0 0.0
      %1334 = vmatprep.subr.mxu0 0.0
      %1335 = vmatpush1.msra.mxu0 0.0
      %1336 = vmatprep.subr.mxu0 0.0
      %1337 = vmatpush1.msra.mxu0 0.0
      %1338 = vmatprep.subr.mxu0 0.0
      %1339 = vmatpush1.msra.mxu0 0.0
      %1340 = vmatprep.subr.mxu0 0.0
      %1341 = vmatpush1.msra.mxu0 0.0
      %1342 = vmatprep.subr.mxu0 0.0
      %1343 = vmatpush1.msra.mxu0 0.0
      %1344 = vmatprep.mubr.f32.mxu0 0.0
      %1345 = vmatmul.mubr.f32.gmra.mrb[0].mxu0 %v1275
      %v1346 = vpop.f32.mrb[0].mxu0
      %v1347 = vadd.f32 %v1266, %v1346
      %v1348 = vpop.f32.mrb[0].mxu0
      %1349 = vmatprep.mubr.f32.mxu0 0.0
      %1350 = vmatmul.mubr.f32.gmra.mrb[0].mxu0 %v1278
      %v1351 = vpop.f32.mrb[0].mxu0
      %v1352 = vadd.f32 %v1271, %v1351
      %v1353 = vpop.f32.mrb[0].mxu0
      %1354 = vdwg.mxu0
      %v1355 = vld [vmem:[#allocation4 + $0x2] sm:$0xff]
      %v1356 = vld [vmem:[#allocation4 + $0xa] sm:$0xff]
      %s1357 = scalar_lea.vmem %s8, 128
      %v1358 = vld [vmem:[%s1357] sm:$0xff]
      %v1359 = vld [vmem:[%s1357 + $0x8] sm:$0xff]
      %v1360 = vld [vmem:[%s1357 + $0x10] sm:$0xff]
      %v1361 = vld [vmem:[%s1357 + $0x18] sm:$0xff]
      %v1362 = vld [vmem:[%s1357 + $0x20] sm:$0xff]
      %v1363 = vld [vmem:[%s1357 + $0x28] sm:$0xff]
      %v1364 = vld [vmem:[%s1357 + $0x30] sm:$0xff]
      %v1365 = vld [vmem:[%s1357 + $0x38] sm:$0xff]
      %v1367 = vsel %vm575, %v1355, 0
      %v1370 = vsel %vm575, %v1356, 0
      %1372 = vmatprep.subr.mxu0 0.0
      %1373 = vmatpush1.msra.mxu0 %v1358
      %1374 = vmatprep.subr.mxu0 0.0
      %1375 = vmatpush1.msra.mxu0 %v1359
      %1376 = vmatprep.subr.mxu0 0.0
      %1377 = vmatpush1.msra.mxu0 %v1360
      %1378 = vmatprep.subr.mxu0 0.0
      %1379 = vmatpush1.msra.mxu0 %v1361
      %1380 = vmatprep.subr.mxu0 0.0
      %1381 = vmatpush1.msra.mxu0 %v1362
      %1382 = vmatprep.subr.mxu0 0.0
      %1383 = vmatpush1.msra.mxu0 %v1363
      %1384 = vmatprep.subr.mxu0 0.0
      %1385 = vmatpush1.msra.mxu0 %v1364
      %1386 = vmatprep.subr.mxu0 0.0
      %1387 = vmatpush1.msra.mxu0 %v1365
      %1388 = vmatprep.subr.mxu0 0.0
      %1389 = vmatpush1.msra.mxu0 0.0
      %1390 = vmatprep.subr.mxu0 0.0
      %1391 = vmatpush1.msra.mxu0 0.0
      %1392 = vmatprep.subr.mxu0 0.0
      %1393 = vmatpush1.msra.mxu0 0.0
      %1394 = vmatprep.subr.mxu0 0.0
      %1395 = vmatpush1.msra.mxu0 0.0
      %1396 = vmatprep.subr.mxu0 0.0
      %1397 = vmatpush1.msra.mxu0 0.0
      %1398 = vmatprep.subr.mxu0 0.0
      %1399 = vmatpush1.msra.mxu0 0.0
      %1400 = vmatprep.subr.mxu0 0.0
      %1401 = vmatpush1.msra.mxu0 0.0
      %1402 = vmatprep.subr.mxu0 0.0
      %1403 = vmatpush1.msra.mxu0 0.0
      %1404 = vmatprep.subr.mxu0 0.0
      %1405 = vmatpush1.msra.mxu0 0.0
      %1406 = vmatprep.subr.mxu0 0.0
      %1407 = vmatpush1.msra.mxu0 0.0
      %1408 = vmatprep.subr.mxu0 0.0
      %1409 = vmatpush1.msra.mxu0 0.0
      %1410 = vmatprep.subr.mxu0 0.0
      %1411 = vmatpush1.msra.mxu0 0.0
      %1412 = vmatprep.subr.mxu0 0.0
      %1413 = vmatpush1.msra.mxu0 0.0
      %1414 = vmatprep.subr.mxu0 0.0
      %1415 = vmatpush1.msra.mxu0 0.0
      %1416 = vmatprep.subr.mxu0 0.0
      %1417 = vmatpush1.msra.mxu0 0.0
      %1418 = vmatprep.subr.mxu0 0.0
      %1419 = vmatpush1.msra.mxu0 0.0
      %1420 = vmatprep.subr.mxu0 0.0
      %1421 = vmatpush1.msra.mxu0 0.0
      %1422 = vmatprep.subr.mxu0 0.0
      %1423 = vmatpush1.msra.mxu0 0.0
      %1424 = vmatprep.subr.mxu0 0.0
      %1425 = vmatpush1.msra.mxu0 0.0
      %1426 = vmatprep.subr.mxu0 0.0
      %1427 = vmatpush1.msra.mxu0 0.0
      %1428 = vmatprep.subr.mxu0 0.0
      %1429 = vmatpush1.msra.mxu0 0.0
      %1430 = vmatprep.subr.mxu0 0.0
      %1431 = vmatpush1.msra.mxu0 0.0
      %1432 = vmatprep.subr.mxu0 0.0
      %1433 = vmatpush1.msra.mxu0 0.0
      %1434 = vmatprep.subr.mxu0 0.0
      %1435 = vmatpush1.msra.mxu0 0.0
      %1436 = vmatprep.mubr.f32.mxu0 0.0
      %1437 = vmatmul.mubr.f32.gmra.mrb[0].mxu0 %v1367
      %v1438 = vpop.f32.mrb[0].mxu0
      %v1439 = vadd.f32 0.0, %v1438
      %v1440 = vpop.f32.mrb[0].mxu0
      %1441 = vmatprep.mubr.f32.mxu0 0.0
      %1442 = vmatmul.mubr.f32.gmra.mrb[0].mxu0 %v1370
      %v1443 = vpop.f32.mrb[0].mxu0
      %v1444 = vadd.f32 0.0, %v1443
      %v1445 = vpop.f32.mrb[0].mxu0
      %1446 = vdwg.mxu0
      %v1447 = vadd.f32 %v1347, %v1439
      %v1448 = vadd.f32 %v1352, %v1444
      %v1449 = vld [vmem:[%s9] sm:$0x1]
      %v1451 = vlaneseq
      %v1452 = vshrl.u32 %v1451, 7
      %v1453 = vsub.s32 0, %v1452
      %v1454 = vrot.slane %v1449, %v1453
      %v1456 = vmul.f32 %v1447, %v1454
      %v1457 = vmul.f32 %v1448, %v1454
      %v1458 = vld [vmem:[%s10] sm:$0x1]
      %v1460 = vlaneseq
      %v1461 = vshrl.u32 %v1460, 7
      %v1462 = vsub.s32 0, %v1461
      %v1463 = vrot.slane %v1458, %v1462
      %v1465 = vadd.f32 %v1456, %v1463
      %v1466 = vadd.f32 %v1457, %v1463
      %v1467 = vmax.f32 %v1465, 0.0
      %v1468 = vmax.f32 %v1466, 0.0
      %1469 = vst.msk [vmem:[%s403] sm:$0xff] %vm575, %v1467
      %1470 = vst.msk [vmem:[%s403 + $0x8] sm:$0xff] %vm575, %v1468
      %p1471 = scmp.lt.s32.totalorder %s22, 1
      %s1472 = scalar_select %p1471, %s22, 1
      %s1473 = smul.addr %s1472, 2
      %s1474 = smul.addr %s1473, 8
      %s1475 = scalar_lea.vmem %s11, %s1474
      // Predicated region
      $region65: #{up_forward.1} parent=63 // pred_check
        %p1476 = pneg %p281
      $region66: #{up_forward.1} parent=63 // pred_check_branch
        %1478 = sbr.rel (%p1476) target = $region68
      $region67: #{up_forward.1} parent=63 // pred_region
        _
      $region68: #{up_forward.1} parent=63 // pred_fallthru
        _
    $region64: #{up_forward.1} parent=5 // pred_fallthru
      _
    %p1479 = scmp.le.s32.totalorder 2, %s17
    // Predicated region
    $region69: #{up_forward.1} parent=5 // pred_check
      %p1480 = pneg %p1479
    $region70: #{up_forward.1} parent=5 // pred_check_branch
      %1482 = sbr.rel (%p1480) target = $region72
    $region71: #{up_forward.1} parent=5 // pred_region
      %s1483 = ssub.s32 %s17, 2
      // Predicated region
      $region73: #{up_forward.1} parent=71 // pred_check
        %p1484 = pneg %p287
      $region74: #{up_forward.1} parent=71 // pred_check_branch
        %1486 = sbr.rel (%p1484) target = $region76
      $region75: #{up_forward.1} parent=71 // pred_region
        %p1487 = scmp.lt.s32.totalorder %s23, 1
        %s1488 = scalar_select %p1487, %s23, 1
        %s1489 = smul.addr %s1488, 2
        %s1490 = smul.addr %s1489, 8
        %s1491 = scalar_lea.vmem %s11, %s1490
      $region76: #{up_forward.1} parent=71 // pred_fallthru
        _
    $region72: #{up_forward.1} parent=5 // pred_fallthru
      _
  $region6: #{up_forward.1} parent=0 // loop_footer
    %s21 = sadd.s32 1, %s17
  $region7: #{up_forward.1} parent=0 // loop_footer_branch
    %16 = sbr.rel target = $region3
  $region8: #{up_forward.1} parent=0 // loop_exit
    _

</llo_original>
